<compile_context>
chip_gen: v5e
topology: v5e:2x2
jax: 0.10.0
libtpu: 0.0.40
codegen_flags: <defaults>
</compile_context>

<pallas_src>
import functools

import jax
import jax.numpy as jnp
from jax import lax
from jax.experimental import pallas as pl
from jax.experimental.pallas import tpu as pltpu

NEG_SLOPE = 0.2
HIGH = jax.lax.Precision.HIGHEST
WDTYPE = jnp.bfloat16      # expanded-weight / staged-activation dtype (single-pass MXU)


# ----------------------------- fused Pallas kernel ---------------------------

def _dense_cct_kernel(*args, num_layers, Nb, H, W, C0, K, G, slope):
    """Whole dense CCT block for one batch block, width-interleaved layout.

    args = (x_ref, [w1_stack, b1_t, w3_stack, b3_t] * num_layers, out_ref,
            cat, hpad, taps)

      x_ref    : (Nb, H, W*C0)              bf16 width-interleaved input block
      w1_stack : (W*(C0+i*G), W*G)          bf16 stacked block-diag 1x1 weights (layer i)
      b1_t     : (1, W*G)                   f32  width-tiled 1x1 bias
      w3_stack : (K*W*G, W*G)               bf16 K row taps of the banded conv||convT
                                                 weights, stacked along the contraction
      b3_t     : (1, W*G)                   f32
      out_ref  : (Nb, L, H, W*G)            f32
      cat      : (Nb*H, W*C0+(L-1)*W*G)     bf16 scratch: persistent dense-concat buffer
      hpad     : (Nb, H+2*pad, W*G)         bf16 scratch: row-padded staging per image
      taps     : (Nb*H, K*W*G)              bf16 scratch: stacked row taps (matmul LHS)
    """
    x_ref = args[0]
    layer_refs = args[1:1 + 4 * num_layers]
    o_ref = args[1 + 4 * num_layers]
    cat, hpad, taps = args[2 + 4 * num_layers:]

    pad = K // 2
    WG = W * G
    WC0 = W * C0
    M = Nb * H

    # Only the 2*pad padding rows per image need zeroing; the centre rows are rewritten
    # every layer.  Done unconditionally each grid step (scratch is per-core persistent).
    if pad > 0:
        hpad[:, :pad, :] = jnp.zeros((Nb, pad, WG), hpad.dtype)
        hpad[:, pad + H:, :] = jnp.zeros((Nb, pad, WG), hpad.dtype)

    # Stage the input block into lanes [0, W*C0) of the dense-concat buffer.
    cat[:, :WC0] = x_ref[...].reshape(M, WC0)

    for i in range(num_layers):
        w1_ref, b1_ref, w3_ref, b3_ref = layer_refs[4 * i:4 * i + 4]
        off = WC0 + i * WG

        # ---- CCTBlock 1x1 conv over the dense concat: ONE long-contraction matmul ----
        h = b1_ref[...] + jnp.dot(cat[:, :off], w1_ref[...],
                                  preferred_element_type=jnp.float32)

        # ---- CCTLayer: KxK conv || convT, 'same' zero padding.  Width taps and zero
        # width-padding are folded into the banded weights; the K row taps are stacked
        # along the contraction so the whole stage is one (M,K*WG) x (K*WG,WG) dot.
        hpad[:, pad:pad + H, :] = h.reshape(Nb, H, WG).astype(hpad.dtype)
        for kh in range(K):
            taps[:, kh * WG:(kh + 1) * WG] = hpad[:, kh:kh + H, :].reshape(M, WG)
        acc = b3_ref[...] + jnp.dot(taps[...], w3_ref[...],
                                    preferred_element_type=jnp.float32)

        # ---- activation (LeakyReLU 0.2), f32 ----
        y = jnp.where(acc > 0, acc, slope * acc)
        o_ref[:, i, :, :] = y.reshape(Nb, H, WG)            # lane-dense store
        if i + 1 < num_layers:                               # append to the dense concat
            cat[:, off:off + WG] = y.astype(cat.dtype)


# ------------------------- weight layout transformations ---------------------

def _block_diag_1x1(w, W):
    """(Cin, Cout) 1x1-conv weight -> (W*Cin, W*Cout) block-diagonal matrix acting on
    the width-interleaved layout (lane index = w*Cin + ci)."""
    Cin, Cout = w.shape
    eye = jnp.eye(W, dtype=w.dtype)
    out = eye[:, None, :, None] * w[None, :, None, :]        # (W, Cin, W, Cout), exact
    return out.reshape(W * Cin, W * Cout)


def _band_conv_w(w_kh, W):
    """(K, Cin, Cout) = (kw, ci, co) slab of an HWIO conv weight at fixed kh ->
    (W*Cin, W*Cout) banded block matrix implementing the width taps of a 'same' conv
    in the width-interleaved layout (zero width-padding absorbed by the band edges)."""
    K, Cin, Cout = w_kh.shape
    pad = K // 2
    wi = jnp.arange(W)[:, None, None]
    wj = jnp.arange(W)[None, :, None]
    kw = jnp.arange(K)[None, None, :]
    sel = (wi == wj + kw - pad).astype(w_kh.dtype)            # (W, W, K), one-hot in kw
    out = jnp.einsum('ijk,kco->icjo', sel, w_kh, precision=HIGH)   # (W, Cin, W, Cout)
    return out.reshape(W * Cin, W * Cout)


def prepare_weights(params, in_channels, W):
    """Host-side, called ONCE outside jit: expand the raw conv weights into the
    kernel's lane-dense, contraction-stacked matmul operands, cast to bf16."""
    G = params[0][1].shape[0]
    K = params[0][2].shape[0]
    WG = W * G
    src_ch = [in_channels] + [G] * len(params)
    prepped = []
    for i, (w1, b1, w3, b3) in enumerate(params):
        blocks, off = [], 0
        for s in range(i + 1):                                # per-source block-diag,
            cs = src_ch[s]                                    # vertically stacked to
            blocks.append(_block_diag_1x1(w1[off:off + cs, :], W))   # match cat lanes
            off += cs
        w1_stack = jnp.concatenate(blocks, axis=0).astype(WDTYPE)    # (W*cin_i, W*G)
        b1_t = jnp.tile(b1, W).reshape(1, WG).astype(jnp.float32)
        w3_stack = jnp.concatenate([_band_conv_w(w3[kh], W) for kh in range(K)],
                                   axis=0).astype(WDTYPE)            # (K*W*G, W*G)
        b3_t = jnp.tile(b3, W).reshape(1, WG).astype(jnp.float32)
        prepped.append((w1_stack, b1_t, w3_stack, b3_t))
    return prepped


# --------------------------------- forward -----------------------------------

def _pick_batch_block(N, cap=8):
    for nb in range(min(N, cap), 0, -1):
        if N % nb == 0:
            return nb
    return 1


def dense_cct_middle_forward(x_nhwc, prepped):
    """x_nhwc: (N,H,W,C0) f32.  prepped: prepare_weights() output.
    Returns (N,H,W,C0+L*G) f32 == torch.cat([inp, y1, ..., yL], dim=C)."""
    N, H, W, C0 = x_nhwc.shape
    L = len(prepped)
    WG = prepped[0][1].shape[1]
    G = WG // W
    K = prepped[0][2].shape[0] // WG
    WC0 = W * C0
    pad = K // 2
    Nb = _pick_batch_block(N)

    x_wi = x_nhwc.reshape(N, H, WC0).astype(WDTYPE)           # width-interleaved, bf16

    ops = [x_wi]
    in_specs = [pl.BlockSpec((Nb, H, WC0), lambda b: (b, 0, 0))]

    def const_spec(a):
        zeros = (0,) * a.ndim
        # TODO(synk): on v7x, pipeline_mode=pl.Buffered(1) would single-buffer these
        # grid-constant operands (halves weight VMEM); omitted for portability since
        # the footprint here is tiny.
        return pl.BlockSpec(a.shape, lambda b, _z=zeros: _z)

    for lay in prepped:
        for a in lay:
            ops.append(a)
            in_specs.append(const_spec(a))

    # Explicit scoped-VMEM budget from the expanded-weight footprint (matters on v5e's
    # 16 MiB default once W/G/L scale).
    wbytes = sum(a.size * a.dtype.itemsize for lay in prepped for a in lay)
    sbytes = 2 * (Nb * H * (WC0 + (L - 1) * WG)
                  + Nb * (H + 2 * pad) * WG
                  + Nb * H * K * WG)
    iobytes = 2 * (Nb * H * WC0 * 2 + Nb * L * H * WG * 4)
    vmem_limit = int(min(64 << 20, max(32 << 20, 2 * wbytes + sbytes + iobytes + (8 << 20))))

    kernel = functools.partial(_dense_cct_kernel, num_layers=L, Nb=Nb, H=H, W=W,
                               C0=C0, K=K, G=G, slope=NEG_SLOPE)
    ys = pl.pallas_call(
        kernel,
        out_shape=jax.ShapeDtypeStruct((N, L, H, WG), jnp.float32),
        grid=(N // Nb,),
        in_specs=in_specs,
        out_specs=pl.BlockSpec((Nb, L, H, WG), lambda b: (b, 0, 0, 0)),
        scratch_shapes=[
            pltpu.VMEM((Nb * H, WC0 + (L - 1) * WG), WDTYPE),   # dense-concat buffer
            pltpu.VMEM((Nb, H + 2 * pad, WG), WDTYPE),          # row-padded staging
            pltpu.VMEM((Nb * H, K * WG), WDTYPE),               # stacked row taps
        ],
        compiler_params=pltpu.CompilerParams(
            dimension_semantics=("parallel",),
            vmem_limit_bytes=vmem_limit),
    )(*ops)

    # Final rearrangement == the module's closing torch.cat (cheap at these sizes).
    # TODO(synk): a consumer accepting the kernel-native (N,L,H,W*G) layout could skip
    # this extra HBM pass entirely.
    ys = ys.reshape(N, L, H, W, G).transpose(0, 2, 3, 1, 4).reshape(N, H, W, L * G)
    return jnp.concatenate([x_nhwc, ys], axis=-1)


# -------------------------- parameter construction ---------------------------

def init_params(key, in_channels, growth_rate, num_layers, kernel_size=3):
    """Deterministic synthetic weights, built in PyTorch layouts then converted."""
    G = growth_rate
    params = []
    for i in range(num_layers):
        cin = in_channels + i * G
        k = jax.random.fold_in(key, i)
        k1, k2, k3, k4, k5, k6 = jax.random.split(k, 6)
        w1_pt = 0.1 * jax.random.normal(k1, (G, cin, 1, 1), jnp.float32)      # Conv2d OIHW
        b1 = 0.05 * jax.random.normal(k2, (G,), jnp.float32)
        wc_pt = 0.1 * jax.random.normal(k3, (G // 2, G, kernel_size, kernel_size), jnp.float32)
        bc = 0.05 * jax.random.normal(k4, (G // 2,), jnp.float32)
        wt_pt = 0.1 * jax.random.normal(k5, (G, G // 2, kernel_size, kernel_size), jnp.float32)
        bt = 0.05 * jax.random.normal(k6, (G // 2,), jnp.float32)

        w1 = jnp.transpose(w1_pt[:, :, 0, 0], (1, 0))                         # (cin, G)
        wc = jnp.transpose(wc_pt, (2, 3, 1, 0))                               # HWIO
        # ConvTranspose2d(stride=1, pad=p, k) == conv with flipped kernel, I/O swapped
        wt = jnp.transpose(wt_pt[:, :, ::-1, ::-1], (2, 3, 0, 1))             # HWIO
        w3 = jnp.concatenate([wc, wt], axis=-1)                               # (K,K,G,G)
        b3 = jnp.concatenate([bc, bt], axis=0)                                # (G,)
        params.append((w1, b1, w3, b3))
    return params


# ------------------------------ JAX reference ---------------------------------

def ref_forward(x, params):
    outs = [x]
    for (w1, b1, w3, b3) in params:
        xc = jnp.concatenate(outs, axis=-1)
        h = jnp.einsum('nhwc,co->nhwo', xc, w1, precision=HIGH) + b1
        p = w3.shape[0] // 2
        y = lax.conv_general_dilated(
            h, w3, window_strides=(1, 1), padding=[(p, p), (p, p)],
            dimension_numbers=('NHWC', 'HWIO', 'NHWC'), precision=HIGH) + b3
        y = jnp.where(y > 0, y, NEG_SLOPE * y)
        outs.append(y)
    return jnp.concatenate(outs, axis=-1)


# ---------------------------------- main --------------------------------------

if __name__ == "__main__":
    in_channels, growth_rate, num_layers, kernel_size = 8, 8, 3, 3
    N, H, W = 2, 16, 16

    key = jax.random.PRNGKey(0)
    kx, kp = jax.random.split(key)
    x_nchw = jax.random.normal(kx, (N, in_channels, H, W), jnp.float32)   # PyTorch NCHW
    params = init_params(kp, in_channels, growth_rate, num_layers, kernel_size)

    x = jnp.transpose(x_nchw, (0, 2, 3, 1))                               # -> NHWC

    # Weight expansion done ONCE, outside the jitted forward (review item).
    prepped = jax.block_until_ready(prepare_weights(params, in_channels, W))

    fwd = jax.jit(dense_cct_middle_forward)
    out = jax.block_until_ready(fwd(x, prepped))

    expected_c = in_channels + num_layers * growth_rate
    assert out.shape == (N, H, W, expected_c), out.shape

    ref = ref_forward(x, params)
    err = float(jnp.max(jnp.abs(out - ref)))
    scale = float(jnp.max(jnp.abs(ref)))
    # bf16 operands (single-pass MXU, f32 accumulation) -> relative-error check.
    assert err <= 3e-2 * scale + 1e-2, (
        f"mismatch vs JAX reference: max abs err = {err}, max |ref| = {scale}")

    print("KERNEL_OK")
</pallas_src>

<mosaic_0001>
module attributes {stable_mosaic.version = 11 : i64} {
  func.func @_dense_cct_kernel(%arg0: i32, %arg1: memref<2x16x128xbf16, #tpu.memory_space<vmem>>, %arg2: memref<128x128xbf16, #tpu.memory_space<vmem>>, %arg3: memref<1x128xf32, #tpu.memory_space<vmem>>, %arg4: memref<384x128xbf16, #tpu.memory_space<vmem>>, %arg5: memref<1x128xf32, #tpu.memory_space<vmem>>, %arg6: memref<256x128xbf16, #tpu.memory_space<vmem>>, %arg7: memref<1x128xf32, #tpu.memory_space<vmem>>, %arg8: memref<384x128xbf16, #tpu.memory_space<vmem>>, %arg9: memref<1x128xf32, #tpu.memory_space<vmem>>, %arg10: memref<384x128xbf16, #tpu.memory_space<vmem>>, %arg11: memref<1x128xf32, #tpu.memory_space<vmem>>, %arg12: memref<384x128xbf16, #tpu.memory_space<vmem>>, %arg13: memref<1x128xf32, #tpu.memory_space<vmem>>, %arg14: memref<2x3x16x128xf32, #tpu.memory_space<vmem>>, %arg15: memref<32x384xbf16, #tpu.memory_space<vmem>>, %arg16: memref<2x18x128xbf16, #tpu.memory_space<vmem>>, %arg17: memref<32x384xbf16, #tpu.memory_space<vmem>>) attributes {dimension_semantics = [#tpu.dimension_semantics<parallel>], iteration_bounds = array<i64: 1>, scalar_prefetch = 0 : i64, scratch_operands = 3 : i64, tpu.core_type = #tpu.core_type<tc>, window_params = [{transform_indices = @transform_0, window_bounds = array<i64: 2, 16, 128>}, {pipeline_mode = #tpu.pipeline_mode<synchronous>, transform_indices = @transform_1, window_bounds = array<i64: 128, 128>}, {pipeline_mode = #tpu.pipeline_mode<synchronous>, transform_indices = @transform_2, window_bounds = array<i64: 1, 128>}, {pipeline_mode = #tpu.pipeline_mode<synchronous>, transform_indices = @transform_3, window_bounds = array<i64: 384, 128>}, {pipeline_mode = #tpu.pipeline_mode<synchronous>, transform_indices = @transform_4, window_bounds = array<i64: 1, 128>}, {pipeline_mode = #tpu.pipeline_mode<synchronous>, transform_indices = @transform_5, window_bounds = array<i64: 256, 128>}, {pipeline_mode = #tpu.pipeline_mode<synchronous>, transform_indices = @transform_6, window_bounds = array<i64: 1, 128>}, {pipeline_mode = #tpu.pipeline_mode<synchronous>, transform_indices = @transform_7, window_bounds = array<i64: 384, 128>}, {pipeline_mode = #tpu.pipeline_mode<synchronous>, transform_indices = @transform_8, window_bounds = array<i64: 1, 128>}, {pipeline_mode = #tpu.pipeline_mode<synchronous>, transform_indices = @transform_9, window_bounds = array<i64: 384, 128>}, {pipeline_mode = #tpu.pipeline_mode<synchronous>, transform_indices = @transform_10, window_bounds = array<i64: 1, 128>}, {pipeline_mode = #tpu.pipeline_mode<synchronous>, transform_indices = @transform_11, window_bounds = array<i64: 384, 128>}, {pipeline_mode = #tpu.pipeline_mode<synchronous>, transform_indices = @transform_12, window_bounds = array<i64: 1, 128>}, {transform_indices = @transform_13, window_bounds = array<i64: 2, 3, 16, 128>}]} {
    %cst = arith.constant 0.000000e+00 : bf16
    %0 = vector.broadcast %cst : bf16 to vector<2x1x128xbf16>
    %c0 = arith.constant 0 : index
    %c0_0 = arith.constant 0 : index
    %c0_1 = arith.constant 0 : index
    %1 = vector.load %arg16[%c0, %c0_0, %c0_1] : memref<2x18x128xbf16, #tpu.memory_space<vmem>>, vector<2x1x128xbf16>
    tpu.vector_store %arg16[%c0, %c0_0, %c0_1], %0 {strides = array<i32>} : memref<2x18x128xbf16, #tpu.memory_space<vmem>>, vector<2x1x128xbf16>,
    %cst_2 = arith.constant 0.000000e+00 : bf16
    %2 = vector.broadcast %cst_2 : bf16 to vector<2x1x128xbf16>
    %c0_3 = arith.constant 0 : index
    %c17 = arith.constant 17 : index
    %c0_4 = arith.constant 0 : index
    %3 = vector.load %arg16[%c0_3, %c17, %c0_4] : memref<2x18x128xbf16, #tpu.memory_space<vmem>>, vector<2x1x128xbf16>
    tpu.vector_store %arg16[%c0_3, %c17, %c0_4], %2 {strides = array<i32>} : memref<2x18x128xbf16, #tpu.memory_space<vmem>>, vector<2x1x128xbf16>,
    %c0_5 = arith.constant 0 : index
    %c0_6 = arith.constant 0 : index
    %c0_7 = arith.constant 0 : index
    %4 = vector.load %arg1[%c0_5, %c0_6, %c0_7] : memref<2x16x128xbf16, #tpu.memory_space<vmem>>, vector<2x16x128xbf16>
    %5 = vector.shape_cast %4 : vector<2x16x128xbf16> to vector<32x128xbf16>
    %c0_8 = arith.constant 0 : index
    %c0_9 = arith.constant 0 : index
    %6 = vector.load %arg15[%c0_8, %c0_9] : memref<32x384xbf16, #tpu.memory_space<vmem>>, vector<32x128xbf16>
    tpu.vector_store %arg15[%c0_8, %c0_9], %5 {strides = array<i32>} : memref<32x384xbf16, #tpu.memory_space<vmem>>, vector<32x128xbf16>,
    %c0_10 = arith.constant 0 : index
    %c0_11 = arith.constant 0 : index
    %7 = vector.load %arg3[%c0_10, %c0_11] : memref<1x128xf32, #tpu.memory_space<vmem>>, vector<1x128xf32>
    %c0_12 = arith.constant 0 : index
    %c0_13 = arith.constant 0 : index
    %8 = vector.load %arg15[%c0_12, %c0_13] : memref<32x384xbf16, #tpu.memory_space<vmem>>, vector<32x128xbf16>
    %c0_14 = arith.constant 0 : index
    %c0_15 = arith.constant 0 : index
    %9 = vector.load %arg2[%c0_14, %c0_15] : memref<128x128xbf16, #tpu.memory_space<vmem>>, vector<128x128xbf16>
    %cst_16 = arith.constant dense<0.000000e+00> : vector<32x128xf32>
    %10 = tpu.matmul %8, %9, %cst_16 {dimension_numbers = #tpu.dot_dimension_numbers<[1], [0], [0], [1], [0, 0, 1, 1], [], []>} : vector<32x128xbf16>, vector<128x128xbf16>, vector<32x128xf32> -> vector<32x128xf32>
    %11 = vector.broadcast %7 : vector<1x128xf32> to vector<32x128xf32>
    %12 = arith.addf %11, %10 : vector<32x128xf32>
    %13 = vector.shape_cast %12 : vector<32x128xf32> to vector<2x16x128xf32>
    %14 = arith.truncf %13 : vector<2x16x128xf32> to vector<2x16x128xbf16>
    %c0_17 = arith.constant 0 : index
    %c1 = arith.constant 1 : index
    %c0_18 = arith.constant 0 : index
    %15 = vector.load %arg16[%c0_17, %c1, %c0_18] : memref<2x18x128xbf16, #tpu.memory_space<vmem>>, vector<2x16x128xbf16>
    tpu.vector_store %arg16[%c0_17, %c1, %c0_18], %14 {strides = array<i32>} : memref<2x18x128xbf16, #tpu.memory_space<vmem>>, vector<2x16x128xbf16>,
    %c0_19 = arith.constant 0 : index
    %c0_20 = arith.constant 0 : index
    %c0_21 = arith.constant 0 : index
    %16 = vector.load %arg16[%c0_19, %c0_20, %c0_21] : memref<2x18x128xbf16, #tpu.memory_space<vmem>>, vector<2x16x128xbf16>
    %17 = vector.shape_cast %16 : vector<2x16x128xbf16> to vector<32x128xbf16>
    %c0_22 = arith.constant 0 : index
    %c0_23 = arith.constant 0 : index
    %18 = vector.load %arg17[%c0_22, %c0_23] : memref<32x384xbf16, #tpu.memory_space<vmem>>, vector<32x128xbf16>
    tpu.vector_store %arg17[%c0_22, %c0_23], %17 {strides = array<i32>} : memref<32x384xbf16, #tpu.memory_space<vmem>>, vector<32x128xbf16>,
    %c0_24 = arith.constant 0 : index
    %c1_25 = arith.constant 1 : index
    %c0_26 = arith.constant 0 : index
    %19 = vector.load %arg16[%c0_24, %c1_25, %c0_26] : memref<2x18x128xbf16, #tpu.memory_space<vmem>>, vector<2x16x128xbf16>
    %20 = vector.shape_cast %19 : vector<2x16x128xbf16> to vector<32x128xbf16>
    %c0_27 = arith.constant 0 : index
    %c128 = arith.constant 128 : index
    %21 = vector.load %arg17[%c0_27, %c128] : memref<32x384xbf16, #tpu.memory_space<vmem>>, vector<32x128xbf16>
    tpu.vector_store %arg17[%c0_27, %c128], %20 {strides = array<i32>} : memref<32x384xbf16, #tpu.memory_space<vmem>>, vector<32x128xbf16>,
    %c0_28 = arith.constant 0 : index
    %c2 = arith.constant 2 : index
    %c0_29 = arith.constant 0 : index
    %22 = vector.load %arg16[%c0_28, %c2, %c0_29] : memref<2x18x128xbf16, #tpu.memory_space<vmem>>, vector<2x16x128xbf16>
    %23 = vector.shape_cast %22 : vector<2x16x128xbf16> to vector<32x128xbf16>
    %c0_30 = arith.constant 0 : index
    %c256 = arith.constant 256 : index
    %24 = vector.load %arg17[%c0_30, %c256] : memref<32x384xbf16, #tpu.memory_space<vmem>>, vector<32x128xbf16>
    tpu.vector_store %arg17[%c0_30, %c256], %23 {strides = array<i32>} : memref<32x384xbf16, #tpu.memory_space<vmem>>, vector<32x128xbf16>,
    %c0_31 = arith.constant 0 : index
    %c0_32 = arith.constant 0 : index
    %25 = vector.load %arg5[%c0_31, %c0_32] : memref<1x128xf32, #tpu.memory_space<vmem>>, vector<1x128xf32>
    %c0_33 = arith.constant 0 : index
    %c0_34 = arith.constant 0 : index
    %26 = vector.load %arg17[%c0_33, %c0_34] : memref<32x384xbf16, #tpu.memory_space<vmem>>, vector<32x384xbf16>
    %c0_35 = arith.constant 0 : index
    %c0_36 = arith.constant 0 : index
    %27 = vector.load %arg4[%c0_35, %c0_36] : memref<384x128xbf16, #tpu.memory_space<vmem>>, vector<384x128xbf16>
    %cst_37 = arith.constant dense<0.000000e+00> : vector<32x128xf32>
    %28 = tpu.matmul %26, %27, %cst_37 {dimension_numbers = #tpu.dot_dimension_numbers<[1], [0], [0], [1], [0, 0, 1, 1], [], []>} : vector<32x384xbf16>, vector<384x128xbf16>, vector<32x128xf32> -> vector<32x128xf32>
    %29 = vector.broadcast %25 : vector<1x128xf32> to vector<32x128xf32>
    %30 = arith.addf %29, %28 : vector<32x128xf32>
    %cst_38 = arith.constant 0.000000e+00 : f32
    %31 = vector.broadcast %cst_38 : f32 to vector<32x128xf32>
    %32 = arith.cmpf ogt, %30, %31 : vector<32x128xf32>
    %cst_39 = arith.constant 2.000000e-01 : f32
    %33 = vector.broadcast %cst_39 : f32 to vector<32x128xf32>
    %34 = arith.mulf %33, %30 : vector<32x128xf32>
    %35 = arith.select %32, %30, %34 : vector<32x128xi1>, vector<32x128xf32>
    %36 = vector.shape_cast %35 : vector<32x128xf32> to vector<2x16x128xf32>
    %c0_40 = arith.constant 0 : index
    %c0_41 = arith.constant 0 : index
    %c0_42 = arith.constant 0 : index
    %c0_43 = arith.constant 0 : index
    %37 = vector.load %arg14[%c0_40, %c0_41, %c0_42, %c0_43] : memref<2x3x16x128xf32, #tpu.memory_space<vmem>>, vector<2x1x16x128xf32>
    %38 = vector.shape_cast %37 : vector<2x1x16x128xf32> to vector<2x16x128xf32>
    %39 = vector.shape_cast %36 : vector<2x16x128xf32> to vector<2x1x16x128xf32>
    tpu.vector_store %arg14[%c0_40, %c0_41, %c0_42, %c0_43], %39 {strides = array<i32>} : memref<2x3x16x128xf32, #tpu.memory_space<vmem>>, vector<2x1x16x128xf32>,
    %40 = arith.truncf %35 : vector<32x128xf32> to vector<32x128xbf16>
    %c0_44 = arith.constant 0 : index
    %c128_45 = arith.constant 128 : index
    %41 = vector.load %arg15[%c0_44, %c128_45] : memref<32x384xbf16, #tpu.memory_space<vmem>>, vector<32x128xbf16>
    tpu.vector_store %arg15[%c0_44, %c128_45], %40 {strides = array<i32>} : memref<32x384xbf16, #tpu.memory_space<vmem>>, vector<32x128xbf16>,
    %c0_46 = arith.constant 0 : index
    %c0_47 = arith.constant 0 : index
    %42 = vector.load %arg7[%c0_46, %c0_47] : memref<1x128xf32, #tpu.memory_space<vmem>>, vector<1x128xf32>
    %c0_48 = arith.constant 0 : index
    %c0_49 = arith.constant 0 : index
    %43 = vector.load %arg15[%c0_48, %c0_49] : memref<32x384xbf16, #tpu.memory_space<vmem>>, vector<32x256xbf16>
    %c0_50 = arith.constant 0 : index
    %c0_51 = arith.constant 0 : index
    %44 = vector.load %arg6[%c0_50, %c0_51] : memref<256x128xbf16, #tpu.memory_space<vmem>>, vector<256x128xbf16>
    %cst_52 = arith.constant dense<0.000000e+00> : vector<32x128xf32>
    %45 = tpu.matmul %43, %44, %cst_52 {dimension_numbers = #tpu.dot_dimension_numbers<[1], [0], [0], [1], [0, 0, 1, 1], [], []>} : vector<32x256xbf16>, vector<256x128xbf16>, vector<32x128xf32> -> vector<32x128xf32>
    %46 = vector.broadcast %42 : vector<1x128xf32> to vector<32x128xf32>
    %47 = arith.addf %46, %45 : vector<32x128xf32>
    %48 = vector.shape_cast %47 : vector<32x128xf32> to vector<2x16x128xf32>
    %49 = arith.truncf %48 : vector<2x16x128xf32> to vector<2x16x128xbf16>
    %c0_53 = arith.constant 0 : index
    %c1_54 = arith.constant 1 : index
    %c0_55 = arith.constant 0 : index
    %50 = vector.load %arg16[%c0_53, %c1_54, %c0_55] : memref<2x18x128xbf16, #tpu.memory_space<vmem>>, vector<2x16x128xbf16>
    tpu.vector_store %arg16[%c0_53, %c1_54, %c0_55], %49 {strides = array<i32>} : memref<2x18x128xbf16, #tpu.memory_space<vmem>>, vector<2x16x128xbf16>,
    %c0_56 = arith.constant 0 : index
    %c0_57 = arith.constant 0 : index
    %c0_58 = arith.constant 0 : index
    %51 = vector.load %arg16[%c0_56, %c0_57, %c0_58] : memref<2x18x128xbf16, #tpu.memory_space<vmem>>, vector<2x16x128xbf16>
    %52 = vector.shape_cast %51 : vector<2x16x128xbf16> to vector<32x128xbf16>
    %c0_59 = arith.constant 0 : index
    %c0_60 = arith.constant 0 : index
    %53 = vector.load %arg17[%c0_59, %c0_60] : memref<32x384xbf16, #tpu.memory_space<vmem>>, vector<32x128xbf16>
    tpu.vector_store %arg17[%c0_59, %c0_60], %52 {strides = array<i32>} : memref<32x384xbf16, #tpu.memory_space<vmem>>, vector<32x128xbf16>,
    %c0_61 = arith.constant 0 : index
    %c1_62 = arith.constant 1 : index
    %c0_63 = arith.constant 0 : index
    %54 = vector.load %arg16[%c0_61, %c1_62, %c0_63] : memref<2x18x128xbf16, #tpu.memory_space<vmem>>, vector<2x16x128xbf16>
    %55 = vector.shape_cast %54 : vector<2x16x128xbf16> to vector<32x128xbf16>
    %c0_64 = arith.constant 0 : index
    %c128_65 = arith.constant 128 : index
    %56 = vector.load %arg17[%c0_64, %c128_65] : memref<32x384xbf16, #tpu.memory_space<vmem>>, vector<32x128xbf16>
    tpu.vector_store %arg17[%c0_64, %c128_65], %55 {strides = array<i32>} : memref<32x384xbf16, #tpu.memory_space<vmem>>, vector<32x128xbf16>,
    %c0_66 = arith.constant 0 : index
    %c2_67 = arith.constant 2 : index
    %c0_68 = arith.constant 0 : index
    %57 = vector.load %arg16[%c0_66, %c2_67, %c0_68] : memref<2x18x128xbf16, #tpu.memory_space<vmem>>, vector<2x16x128xbf16>
    %58 = vector.shape_cast %57 : vector<2x16x128xbf16> to vector<32x128xbf16>
    %c0_69 = arith.constant 0 : index
    %c256_70 = arith.constant 256 : index
    %59 = vector.load %arg17[%c0_69, %c256_70] : memref<32x384xbf16, #tpu.memory_space<vmem>>, vector<32x128xbf16>
    tpu.vector_store %arg17[%c0_69, %c256_70], %58 {strides = array<i32>} : memref<32x384xbf16, #tpu.memory_space<vmem>>, vector<32x128xbf16>,
    %c0_71 = arith.constant 0 : index
    %c0_72 = arith.constant 0 : index
    %60 = vector.load %arg9[%c0_71, %c0_72] : memref<1x128xf32, #tpu.memory_space<vmem>>, vector<1x128xf32>
    %c0_73 = arith.constant 0 : index
    %c0_74 = arith.constant 0 : index
    %61 = vector.load %arg17[%c0_73, %c0_74] : memref<32x384xbf16, #tpu.memory_space<vmem>>, vector<32x384xbf16>
    %c0_75 = arith.constant 0 : index
    %c0_76 = arith.constant 0 : index
    %62 = vector.load %arg8[%c0_75, %c0_76] : memref<384x128xbf16, #tpu.memory_space<vmem>>, vector<384x128xbf16>
    %cst_77 = arith.constant dense<0.000000e+00> : vector<32x128xf32>
    %63 = tpu.matmul %61, %62, %cst_77 {dimension_numbers = #tpu.dot_dimension_numbers<[1], [0], [0], [1], [0, 0, 1, 1], [], []>} : vector<32x384xbf16>, vector<384x128xbf16>, vector<32x128xf32> -> vector<32x128xf32>
    %64 = vector.broadcast %60 : vector<1x128xf32> to vector<32x128xf32>
    %65 = arith.addf %64, %63 : vector<32x128xf32>
    %cst_78 = arith.constant 0.000000e+00 : f32
    %66 = vector.broadcast %cst_78 : f32 to vector<32x128xf32>
    %67 = arith.cmpf ogt, %65, %66 : vector<32x128xf32>
    %cst_79 = arith.constant 2.000000e-01 : f32
    %68 = vector.broadcast %cst_79 : f32 to vector<32x128xf32>
    %69 = arith.mulf %68, %65 : vector<32x128xf32>
    %70 = arith.select %67, %65, %69 : vector<32x128xi1>, vector<32x128xf32>
    %71 = vector.shape_cast %70 : vector<32x128xf32> to vector<2x16x128xf32>
    %c0_80 = arith.constant 0 : index
    %c1_81 = arith.constant 1 : index
    %c0_82 = arith.constant 0 : index
    %c0_83 = arith.constant 0 : index
    %72 = vector.load %arg14[%c0_80, %c1_81, %c0_82, %c0_83] : memref<2x3x16x128xf32, #tpu.memory_space<vmem>>, vector<2x1x16x128xf32>
    %73 = vector.shape_cast %72 : vector<2x1x16x128xf32> to vector<2x16x128xf32>
    %74 = vector.shape_cast %71 : vector<2x16x128xf32> to vector<2x1x16x128xf32>
    tpu.vector_store %arg14[%c0_80, %c1_81, %c0_82, %c0_83], %74 {strides = array<i32>} : memref<2x3x16x128xf32, #tpu.memory_space<vmem>>, vector<2x1x16x128xf32>,
    %75 = arith.truncf %70 : vector<32x128xf32> to vector<32x128xbf16>
    %c0_84 = arith.constant 0 : index
    %c256_85 = arith.constant 256 : index
    %76 = vector.load %arg15[%c0_84, %c256_85] : memref<32x384xbf16, #tpu.memory_space<vmem>>, vector<32x128xbf16>
    tpu.vector_store %arg15[%c0_84, %c256_85], %75 {strides = array<i32>} : memref<32x384xbf16, #tpu.memory_space<vmem>>, vector<32x128xbf16>,
    %c0_86 = arith.constant 0 : index
    %c0_87 = arith.constant 0 : index
    %77 = vector.load %arg11[%c0_86, %c0_87] : memref<1x128xf32, #tpu.memory_space<vmem>>, vector<1x128xf32>
    %c0_88 = arith.constant 0 : index
    %c0_89 = arith.constant 0 : index
    %78 = vector.load %arg15[%c0_88, %c0_89] : memref<32x384xbf16, #tpu.memory_space<vmem>>, vector<32x384xbf16>
    %c0_90 = arith.constant 0 : index
    %c0_91 = arith.constant 0 : index
    %79 = vector.load %arg10[%c0_90, %c0_91] : memref<384x128xbf16, #tpu.memory_space<vmem>>, vector<384x128xbf16>
    %cst_92 = arith.constant dense<0.000000e+00> : vector<32x128xf32>
    %80 = tpu.matmul %78, %79, %cst_92 {dimension_numbers = #tpu.dot_dimension_numbers<[1], [0], [0], [1], [0, 0, 1, 1], [], []>} : vector<32x384xbf16>, vector<384x128xbf16>, vector<32x128xf32> -> vector<32x128xf32>
    %81 = vector.broadcast %77 : vector<1x128xf32> to vector<32x128xf32>
    %82 = arith.addf %81, %80 : vector<32x128xf32>
    %83 = vector.shape_cast %82 : vector<32x128xf32> to vector<2x16x128xf32>
    %84 = arith.truncf %83 : vector<2x16x128xf32> to vector<2x16x128xbf16>
    %c0_93 = arith.constant 0 : index
    %c1_94 = arith.constant 1 : index
    %c0_95 = arith.constant 0 : index
    %85 = vector.load %arg16[%c0_93, %c1_94, %c0_95] : memref<2x18x128xbf16, #tpu.memory_space<vmem>>, vector<2x16x128xbf16>
    tpu.vector_store %arg16[%c0_93, %c1_94, %c0_95], %84 {strides = array<i32>} : memref<2x18x128xbf16, #tpu.memory_space<vmem>>, vector<2x16x128xbf16>,
    %c0_96 = arith.constant 0 : index
    %c0_97 = arith.constant 0 : index
    %c0_98 = arith.constant 0 : index
    %86 = vector.load %arg16[%c0_96, %c0_97, %c0_98] : memref<2x18x128xbf16, #tpu.memory_space<vmem>>, vector<2x16x128xbf16>
    %87 = vector.shape_cast %86 : vector<2x16x128xbf16> to vector<32x128xbf16>
    %c0_99 = arith.constant 0 : index
    %c0_100 = arith.constant 0 : index
    %88 = vector.load %arg17[%c0_99, %c0_100] : memref<32x384xbf16, #tpu.memory_space<vmem>>, vector<32x128xbf16>
    tpu.vector_store %arg17[%c0_99, %c0_100], %87 {strides = array<i32>} : memref<32x384xbf16, #tpu.memory_space<vmem>>, vector<32x128xbf16>,
    %c0_101 = arith.constant 0 : index
    %c1_102 = arith.constant 1 : index
    %c0_103 = arith.constant 0 : index
    %89 = vector.load %arg16[%c0_101, %c1_102, %c0_103] : memref<2x18x128xbf16, #tpu.memory_space<vmem>>, vector<2x16x128xbf16>
    %90 = vector.shape_cast %89 : vector<2x16x128xbf16> to vector<32x128xbf16>
    %c0_104 = arith.constant 0 : index
    %c128_105 = arith.constant 128 : index
    %91 = vector.load %arg17[%c0_104, %c128_105] : memref<32x384xbf16, #tpu.memory_space<vmem>>, vector<32x128xbf16>
    tpu.vector_store %arg17[%c0_104, %c128_105], %90 {strides = array<i32>} : memref<32x384xbf16, #tpu.memory_space<vmem>>, vector<32x128xbf16>,
    %c0_106 = arith.constant 0 : index
    %c2_107 = arith.constant 2 : index
    %c0_108 = arith.constant 0 : index
    %92 = vector.load %arg16[%c0_106, %c2_107, %c0_108] : memref<2x18x128xbf16, #tpu.memory_space<vmem>>, vector<2x16x128xbf16>
    %93 = vector.shape_cast %92 : vector<2x16x128xbf16> to vector<32x128xbf16>
    %c0_109 = arith.constant 0 : index
    %c256_110 = arith.constant 256 : index
    %94 = vector.load %arg17[%c0_109, %c256_110] : memref<32x384xbf16, #tpu.memory_space<vmem>>, vector<32x128xbf16>
    tpu.vector_store %arg17[%c0_109, %c256_110], %93 {strides = array<i32>} : memref<32x384xbf16, #tpu.memory_space<vmem>>, vector<32x128xbf16>,
    %c0_111 = arith.constant 0 : index
    %c0_112 = arith.constant 0 : index
    %95 = vector.load %arg13[%c0_111, %c0_112] : memref<1x128xf32, #tpu.memory_space<vmem>>, vector<1x128xf32>
    %c0_113 = arith.constant 0 : index
    %c0_114 = arith.constant 0 : index
    %96 = vector.load %arg17[%c0_113, %c0_114] : memref<32x384xbf16, #tpu.memory_space<vmem>>, vector<32x384xbf16>
    %c0_115 = arith.constant 0 : index
    %c0_116 = arith.constant 0 : index
    %97 = vector.load %arg12[%c0_115, %c0_116] : memref<384x128xbf16, #tpu.memory_space<vmem>>, vector<384x128xbf16>
    %cst_117 = arith.constant dense<0.000000e+00> : vector<32x128xf32>
    %98 = tpu.matmul %96, %97, %cst_117 {dimension_numbers = #tpu.dot_dimension_numbers<[1], [0], [0], [1], [0, 0, 1, 1], [], []>} : vector<32x384xbf16>, vector<384x128xbf16>, vector<32x128xf32> -> vector<32x128xf32>
    %99 = vector.broadcast %95 : vector<1x128xf32> to vector<32x128xf32>
    %100 = arith.addf %99, %98 : vector<32x128xf32>
    %cst_118 = arith.constant 0.000000e+00 : f32
    %101 = vector.broadcast %cst_118 : f32 to vector<32x128xf32>
    %102 = arith.cmpf ogt, %100, %101 : vector<32x128xf32>
    %cst_119 = arith.constant 2.000000e-01 : f32
    %103 = vector.broadcast %cst_119 : f32 to vector<32x128xf32>
    %104 = arith.mulf %103, %100 : vector<32x128xf32>
    %105 = arith.select %102, %100, %104 : vector<32x128xi1>, vector<32x128xf32>
    %106 = vector.shape_cast %105 : vector<32x128xf32> to vector<2x16x128xf32>
    %c0_120 = arith.constant 0 : index
    %c2_121 = arith.constant 2 : index
    %c0_122 = arith.constant 0 : index
    %c0_123 = arith.constant 0 : index
    %107 = vector.load %arg14[%c0_120, %c2_121, %c0_122, %c0_123] : memref<2x3x16x128xf32, #tpu.memory_space<vmem>>, vector<2x1x16x128xf32>
    %108 = vector.shape_cast %107 : vector<2x1x16x128xf32> to vector<2x16x128xf32>
    %109 = vector.shape_cast %106 : vector<2x16x128xf32> to vector<2x1x16x128xf32>
    tpu.vector_store %arg14[%c0_120, %c2_121, %c0_122, %c0_123], %109 {strides = array<i32>} : memref<2x3x16x128xf32, #tpu.memory_space<vmem>>, vector<2x1x16x128xf32>,
    return
  }
  func.func @transform_0(%arg0: i32) -> (i32, i32, i32) {
    %c0_i32 = arith.constant 0 : i32
    %c0_i32_0 = arith.constant 0 : i32
    %c0_i32_1 = arith.constant 0 : i32
    return %arg0, %c0_i32, %c0_i32_0 : i32, i32, i32
  }
  func.func @transform_1(%arg0: i32) -> (i32, i32) {
    %c0_i32 = arith.constant 0 : i32
    %c0_i32_0 = arith.constant 0 : i32
    %c0_i32_1 = arith.constant 0 : i32
    return %c0_i32, %c0_i32_0 : i32, i32
  }
  func.func @transform_2(%arg0: i32) -> (i32, i32) {
    %c0_i32 = arith.constant 0 : i32
    %c0_i32_0 = arith.constant 0 : i32
    %c0_i32_1 = arith.constant 0 : i32
    return %c0_i32, %c0_i32_0 : i32, i32
  }
  func.func @transform_3(%arg0: i32) -> (i32, i32) {
    %c0_i32 = arith.constant 0 : i32
    %c0_i32_0 = arith.constant 0 : i32
    %c0_i32_1 = arith.constant 0 : i32
    return %c0_i32, %c0_i32_0 : i32, i32
  }
  func.func @transform_4(%arg0: i32) -> (i32, i32) {
    %c0_i32 = arith.constant 0 : i32
    %c0_i32_0 = arith.constant 0 : i32
    %c0_i32_1 = arith.constant 0 : i32
    return %c0_i32, %c0_i32_0 : i32, i32
  }
  func.func @transform_5(%arg0: i32) -> (i32, i32) {
    %c0_i32 = arith.constant 0 : i32
    %c0_i32_0 = arith.constant 0 : i32
    %c0_i32_1 = arith.constant 0 : i32
    return %c0_i32, %c0_i32_0 : i32, i32
  }
  func.func @transform_6(%arg0: i32) -> (i32, i32) {
    %c0_i32 = arith.constant 0 : i32
    %c0_i32_0 = arith.constant 0 : i32
    %c0_i32_1 = arith.constant 0 : i32
    return %c0_i32, %c0_i32_0 : i32, i32
  }
  func.func @transform_7(%arg0: i32) -> (i32, i32) {
    %c0_i32 = arith.constant 0 : i32
    %c0_i32_0 = arith.constant 0 : i32
    %c0_i32_1 = arith.constant 0 : i32
    return %c0_i32, %c0_i32_0 : i32, i32
  }
  func.func @transform_8(%arg0: i32) -> (i32, i32) {
    %c0_i32 = arith.constant 0 : i32
    %c0_i32_0 = arith.constant 0 : i32
    %c0_i32_1 = arith.constant 0 : i32
    return %c0_i32, %c0_i32_0 : i32, i32
  }
  func.func @transform_9(%arg0: i32) -> (i32, i32) {
    %c0_i32 = arith.constant 0 : i32
    %c0_i32_0 = arith.constant 0 : i32
    %c0_i32_1 = arith.constant 0 : i32
    return %c0_i32, %c0_i32_0 : i32, i32
  }
  func.func @transform_10(%arg0: i32) -> (i32, i32) {
    %c0_i32 = arith.constant 0 : i32
    %c0_i32_0 = arith.constant 0 : i32
    %c0_i32_1 = arith.constant 0 : i32
    return %c0_i32, %c0_i32_0 : i32, i32
  }
  func.func @transform_11(%arg0: i32) -> (i32, i32) {
    %c0_i32 = arith.constant 0 : i32
    %c0_i32_0 = arith.constant 0 : i32
    %c0_i32_1 = arith.constant 0 : i32
    return %c0_i32, %c0_i32_0 : i32, i32
  }
  func.func @transform_12(%arg0: i32) -> (i32, i32) {
    %c0_i32 = arith.constant 0 : i32
    %c0_i32_0 = arith.constant 0 : i32
    %c0_i32_1 = arith.constant 0 : i32
    return %c0_i32, %c0_i32_0 : i32, i32
  }
  func.func @transform_13(%arg0: i32) -> (i32, i32, i32, i32) {
    %c0_i32 = arith.constant 0 : i32
    %c0_i32_0 = arith.constant 0 : i32
    %c0_i32_1 = arith.constant 0 : i32
    %c0_i32_2 = arith.constant 0 : i32
    return %arg0, %c0_i32, %c0_i32_0, %c0_i32_1 : i32, i32, i32, i32
  }
}

</mosaic_0001>

<llo_original>
// kernel: dense_cct_middle_forward.1
$region0: #{dense_cct_middle_forward.1}
  #allocation0 [shape = 'u32[]', space=smem, size = 0x4, offset = 0x4, fixed_abs, tag = 'smem constant byte address 0x4 - core index']
  #allocation1 [shape = 'u32[72,128]{1,0:T(1,128)}', space=vmem, size = 0x9000, scoped, tag = 'internal scratch']
  #allocation2 [shape = 'bf16[32,384]{1,0:T(8,128)(2,1)}', space=vmem, size = 0x6000, scoped, tag = 'scratch operand']
  #allocation3 [shape = 'bf16[2,18,128]{2,1,0:T(8,128)(2,1)}', space=vmem, size = 0x3000, scoped, tag = 'scratch operand']
  #allocation4 [shape = 'bf16[32,384]{1,0:T(8,128)(2,1)}', space=vmem, size = 0x6000, scoped, tag = 'scratch operand']
  %s0 = inlined_call_operand.vmem [shape: bf16[2,16,128], index: 0, kind: input, shape index: {}]
  %s1 = inlined_call_operand.hbm [shape: bf16[128,128], index: 1, kind: input, shape index: {}]
  %s2 = inlined_call_operand.vmem [shape: f32[1,128], index: 2, kind: input, shape index: {}]
  %s3 = inlined_call_operand.vmem [shape: bf16[384,128], index: 3, kind: input, shape index: {}]
  %s4 = inlined_call_operand.vmem [shape: f32[1,128], index: 4, kind: input, shape index: {}]
  %s5 = inlined_call_operand.hbm [shape: bf16[256,128], index: 5, kind: input, shape index: {}]
  %s6 = inlined_call_operand.vmem [shape: f32[1,128], index: 6, kind: input, shape index: {}]
  %s7 = inlined_call_operand.vmem [shape: bf16[384,128], index: 7, kind: input, shape index: {}]
  %s8 = inlined_call_operand.vmem [shape: f32[1,128], index: 8, kind: input, shape index: {}]
  %s9 = inlined_call_operand.vmem [shape: bf16[384,128], index: 9, kind: input, shape index: {}]
  %s10 = inlined_call_operand.vmem [shape: f32[1,128], index: 10, kind: input, shape index: {}]
  %s11 = inlined_call_operand.vmem [shape: bf16[384,128], index: 11, kind: input, shape index: {}]
  %s12 = inlined_call_operand.vmem [shape: f32[1,128], index: 12, kind: input, shape index: {}]
  %s13 = inlined_call_operand.vmem [shape: f32[2,3,16,128], index: 13, kind: output, shape index: {}]
  %s14 = sld [smem:[#allocation0]]
  $region70: #{dense_cct_middle_forward.1} parent=0
    _
  %s16 = ssub.s32 1, %s14
  %s17 = scalar_select 0, %s16, %s14
  $region1: #{dense_cct_middle_forward.1} parent=0
    #allocation5 [shape = 'u8[32768]{0}', space=vmem, size = 0x8000, scoped, tag = 'input window, operand 1, single buffered']
    #allocation6 [shape = 's32[1]{0}', space=sflag, size = 0x4, scoped, tag = 'scoped memory for dense_cct_middle_forward.1']
    #allocation7 [shape = 'u8[65536]{0}', space=vmem, size = 0x10000, scoped, tag = 'input window, operand 5, single buffered']
    #allocation8 [shape = 's32[1]{0}', space=sflag, size = 0x4, scoped, tag = 'scoped memory for dense_cct_middle_forward.1']
    %18 = vsyncpa [#allocation6], 0
    %19 = vsyncpa [#allocation8], 0
    // Predicated region
    $region2: #{dense_cct_middle_forward.1} parent=1 // pred_check
      _
    $region3: #{dense_cct_middle_forward.1} parent=1 // pred_check_branch
      %21 = sbr.rel (0) target = $region5
    $region4: #{dense_cct_middle_forward.1} parent=1 // pred_region
      _
    $region5: #{dense_cct_middle_forward.1} parent=1 // pred_fallthru
      _
    // Predicated region
    $region6: #{dense_cct_middle_forward.1} parent=1 // pred_check
      _
    $region7: #{dense_cct_middle_forward.1} parent=1 // pred_check_branch
      %23 = sbr.rel (0) target = $region9
    $region8: #{dense_cct_middle_forward.1} parent=1 // pred_region
      %25 = vsyncadd [#allocation6], 0
      %s26 = sshll.u32 %s1, 4
      %s27 = int_to_ptr.hbm [resolvable:$true] %s26
      %s28 = sshll.u32 [#allocation5], 4
      %s29 = int_to_ptr.vmem [resolvable:$true] %s28
      %34 = dma.hbm_to_vmem [thread:$0]  %s27, 1024, %s29, [#allocation6], 64, 64, 4
    $region9: #{dense_cct_middle_forward.1} parent=1 // pred_fallthru
      _
    // Predicated region
    $region10: #{dense_cct_middle_forward.1} parent=1 // pred_check
      _
    $region11: #{dense_cct_middle_forward.1} parent=1 // pred_check_branch
      %36 = sbr.rel (0) target = $region13
    $region12: #{dense_cct_middle_forward.1} parent=1 // pred_region
      _
    $region13: #{dense_cct_middle_forward.1} parent=1 // pred_fallthru
      _
    // Predicated region
    $region14: #{dense_cct_middle_forward.1} parent=1 // pred_check
      _
    $region15: #{dense_cct_middle_forward.1} parent=1 // pred_check_branch
      %38 = sbr.rel (0) target = $region17
    $region16: #{dense_cct_middle_forward.1} parent=1 // pred_region
      _
    $region17: #{dense_cct_middle_forward.1} parent=1 // pred_fallthru
      _
    // Predicated region
    $region18: #{dense_cct_middle_forward.1} parent=1 // pred_check
      _
    $region19: #{dense_cct_middle_forward.1} parent=1 // pred_check_branch
      %40 = sbr.rel (0) target = $region21
    $region20: #{dense_cct_middle_forward.1} parent=1 // pred_region
      _
    $region21: #{dense_cct_middle_forward.1} parent=1 // pred_fallthru
      _
    // Predicated region
    $region22: #{dense_cct_middle_forward.1} parent=1 // pred_check
      _
    $region23: #{dense_cct_middle_forward.1} parent=1 // pred_check_branch
      %42 = sbr.rel (0) target = $region25
    $region24: #{dense_cct_middle_forward.1} parent=1 // pred_region
      %44 = vsyncadd [#allocation8], 0
      %s45 = sshll.u32 %s5, 4
      %s46 = int_to_ptr.hbm [resolvable:$true] %s45
      %s47 = sshll.u32 [#allocation7], 4
      %s48 = int_to_ptr.vmem [resolvable:$true] %s47
      %53 = dma.hbm_to_vmem [thread:$0]  %s46, 2048, %s48, [#allocation8], 64, 64, 4
    $region25: #{dense_cct_middle_forward.1} parent=1 // pred_fallthru
      _
    // Predicated region
    $region26: #{dense_cct_middle_forward.1} parent=1 // pred_check
      _
    $region27: #{dense_cct_middle_forward.1} parent=1 // pred_check_branch
      %55 = sbr.rel (0) target = $region29
    $region28: #{dense_cct_middle_forward.1} parent=1 // pred_region
      _
    $region29: #{dense_cct_middle_forward.1} parent=1 // pred_fallthru
      _
    // Predicated region
    $region30: #{dense_cct_middle_forward.1} parent=1 // pred_check
      _
    $region31: #{dense_cct_middle_forward.1} parent=1 // pred_check_branch
      %57 = sbr.rel (0) target = $region33
    $region32: #{dense_cct_middle_forward.1} parent=1 // pred_region
      _
    $region33: #{dense_cct_middle_forward.1} parent=1 // pred_fallthru
      _
    // Predicated region
    $region34: #{dense_cct_middle_forward.1} parent=1 // pred_check
      _
    $region35: #{dense_cct_middle_forward.1} parent=1 // pred_check_branch
      %59 = sbr.rel (0) target = $region37
    $region36: #{dense_cct_middle_forward.1} parent=1 // pred_region
      _
    $region37: #{dense_cct_middle_forward.1} parent=1 // pred_fallthru
      _
    // Predicated region
    $region38: #{dense_cct_middle_forward.1} parent=1 // pred_check
      _
    $region39: #{dense_cct_middle_forward.1} parent=1 // pred_check_branch
      %61 = sbr.rel (0) target = $region41
    $region40: #{dense_cct_middle_forward.1} parent=1 // pred_region
      _
    $region41: #{dense_cct_middle_forward.1} parent=1 // pred_fallthru
      _
    // Predicated region
    $region42: #{dense_cct_middle_forward.1} parent=1 // pred_check
      _
    $region43: #{dense_cct_middle_forward.1} parent=1 // pred_check_branch
      %63 = sbr.rel (0) target = $region45
    $region44: #{dense_cct_middle_forward.1} parent=1 // pred_region
      _
    $region45: #{dense_cct_middle_forward.1} parent=1 // pred_fallthru
      _
    // Predicated region
    $region46: #{dense_cct_middle_forward.1} parent=1 // pred_check
      _
    $region47: #{dense_cct_middle_forward.1} parent=1 // pred_check_branch
      %65 = sbr.rel (0) target = $region49
    $region48: #{dense_cct_middle_forward.1} parent=1 // pred_region
      _
    $region49: #{dense_cct_middle_forward.1} parent=1 // pred_fallthru
      _
    // Predicated region
    $region50: #{dense_cct_middle_forward.1} parent=1 // pred_check
      _
    $region51: #{dense_cct_middle_forward.1} parent=1 // pred_check_branch
      %67 = sbr.rel (0) target = $region53
    $region52: #{dense_cct_middle_forward.1} parent=1 // pred_region
      _
    $region53: #{dense_cct_middle_forward.1} parent=1 // pred_fallthru
      _
    // Predicated region
    $region54: #{dense_cct_middle_forward.1} parent=1 // pred_check
      _
    $region55: #{dense_cct_middle_forward.1} parent=1 // pred_check_branch
      %69 = sbr.rel (0) target = $region57
    $region56: #{dense_cct_middle_forward.1} parent=1 // pred_region
      %71 = dma.done [#allocation6], 1024
    $region57: #{dense_cct_middle_forward.1} parent=1 // pred_fallthru
      _
    // Predicated region
    $region58: #{dense_cct_middle_forward.1} parent=1 // pred_check
      _
    $region59: #{dense_cct_middle_forward.1} parent=1 // pred_check_branch
      %73 = sbr.rel (0) target = $region61
    $region60: #{dense_cct_middle_forward.1} parent=1 // pred_region
      %75 = dma.done [#allocation8], 2048
    $region61: #{dense_cct_middle_forward.1} parent=1 // pred_fallthru
      _
    %vm77 = vcmask 1040384
    %vm78 = vsmask.f32 256
    %vm79 = vmand %vm77, %vm78
    %v80 = vld [vmem:[#allocation3] sm:$0x1]
    %v81 = vsel %vm79, 0, %v80
    %82 = vst [vmem:[#allocation3] sm:$0x1] %v81
    %v83 = vld [vmem:[#allocation3 + $0xc] sm:$0x1]
    %v84 = vsel %vm79, 0, %v83
    %85 = vst [vmem:[#allocation3 + $0xc] sm:$0x1] %v84
    %vm86 = vsmask.f32 7938
    %vm87 = vmand %vm77, %vm86
    %v88 = vld [vmem:[#allocation3 + $0x8] sm:$0x1]
    %v89 = vsel %vm87, 0, %v88
    %90 = vst [vmem:[#allocation3 + $0x8] sm:$0x1] %v89
    %v91 = vld [vmem:[#allocation3 + $0x14] sm:$0x1]
    %v92 = vsel %vm87, 0, %v91
    %93 = vst [vmem:[#allocation3 + $0x14] sm:$0x1] %v92
    %v94 = vld [vmem:[%s0] sm:$0xf]
    %v95 = vld [vmem:[%s0 + $0x4] sm:$0xf]
    %v96 = vld [vmem:[%s0 + $0x8] sm:$0xf]
    %v97 = vld [vmem:[%s0 + $0xc] sm:$0xf]
    %98 = vst [vmem:[#allocation2] sm:$0xf] %v94
    %99 = vst [vmem:[#allocation2 + $0xc] sm:$0xf] %v95
    %100 = vst [vmem:[#allocation2 + $0x18] sm:$0xf] %v96
    %101 = vst [vmem:[#allocation2 + $0x24] sm:$0xf] %v97
    %v102 = vld [vmem:[%s2] sm:$0x1]
    %v103 = vld [vmem:[#allocation2] sm:$0xf]
    %v104 = vld [vmem:[#allocation2 + $0xc] sm:$0xf]
    %v105 = vld [vmem:[#allocation2 + $0x18] sm:$0xf]
    %v106 = vld [vmem:[#allocation2 + $0x24] sm:$0xf]
    %v107 = vld [vmem:[#allocation5] sm:$0xf]
    %v108 = vld [vmem:[#allocation5 + $0x4] sm:$0xf]
    %v109 = vld [vmem:[#allocation5 + $0x8] sm:$0xf]
    %v110 = vld [vmem:[#allocation5 + $0xc] sm:$0xf]
    %v111 = vld [vmem:[#allocation5 + $0x10] sm:$0xf]
    %v112 = vld [vmem:[#allocation5 + $0x14] sm:$0xf]
    %v113 = vld [vmem:[#allocation5 + $0x18] sm:$0xf]
    %v114 = vld [vmem:[#allocation5 + $0x1c] sm:$0xf]
    %v115 = vld [vmem:[#allocation5 + $0x20] sm:$0xf]
    %v116 = vld [vmem:[#allocation5 + $0x24] sm:$0xf]
    %v117 = vld [vmem:[#allocation5 + $0x28] sm:$0xf]
    %v118 = vld [vmem:[#allocation5 + $0x2c] sm:$0xf]
    %v119 = vld [vmem:[#allocation5 + $0x30] sm:$0xf]
    %v120 = vld [vmem:[#allocation5 + $0x34] sm:$0xf]
    %v121 = vld [vmem:[#allocation5 + $0x38] sm:$0xf]
    %v122 = vld [vmem:[#allocation5 + $0x3c] sm:$0xf]
    %v127 = vunpack.c.l.b16 %v103
    %v128 = vunpack.c.l.b16 %v104
    %v129 = vunpack.c.l.b16 %v105
    %v130 = vunpack.c.l.b16 %v106
    %v131 = vpack.c.b16 %v128, %v127
    %v132 = vpack.c.b16 %v130, %v129
    %v151 = vunpack.c.l.b16 %v107
    %v152 = vunpack.c.l.b16 %v108
    %v153 = vunpack.c.l.b16 %v109
    %v154 = vunpack.c.l.b16 %v110
    %v155 = vunpack.c.l.b16 %v111
    %v156 = vunpack.c.l.b16 %v112
    %v157 = vunpack.c.l.b16 %v113
    %v158 = vunpack.c.l.b16 %v114
    %v159 = vunpack.c.l.b16 %v115
    %v160 = vunpack.c.l.b16 %v116
    %v161 = vunpack.c.l.b16 %v117
    %v162 = vunpack.c.l.b16 %v118
    %v163 = vunpack.c.l.b16 %v119
    %v164 = vunpack.c.l.b16 %v120
    %v165 = vunpack.c.l.b16 %v121
    %v166 = vunpack.c.l.b16 %v122
    %v167 = vpack.c.b16 %v152, %v151
    %v168 = vpack.c.b16 %v154, %v153
    %v169 = vpack.c.b16 %v156, %v155
    %v170 = vpack.c.b16 %v158, %v157
    %v171 = vpack.c.b16 %v160, %v159
    %v172 = vpack.c.b16 %v162, %v161
    %v173 = vpack.c.b16 %v164, %v163
    %v174 = vpack.c.b16 %v166, %v165
    %183 = vmatpush.bf16.msra.mxu0 %v174
    %184 = vmatpush.bf16.msra.mxu0 %v173
    %185 = vmatpush.bf16.msra.mxu0 %v172
    %186 = vmatpush.bf16.msra.mxu0 %v171
    %187 = vmatpush.bf16.msra.mxu0 %v170
    %188 = vmatpush.bf16.msra.mxu0 %v169
    %189 = vmatpush.bf16.msra.mxu0 %v168
    %190 = vmatpush.bf16.msra.mxu0 %v167
    %191 = vmatmul.bf16.gmra.mxu0 %v131
    %v192 = vpop.f32.mrf.mxu0
    %v193 = vadd.f32 0.0, %v192
    %v194 = vpop.f32.mrf.mxu0
    %v195 = vadd.f32 0.0, %v194
    %196 = vmatmul.bf16.gmra.mxu0 %v132
    %v197 = vpop.f32.mrf.mxu0
    %v198 = vadd.f32 0.0, %v197
    %v199 = vpop.f32.mrf.mxu0
    %v200 = vadd.f32 0.0, %v199
    %201 = vdwg.mxu0
    %v203 = vperm.slane %v102, 0
    %v205 = vadd.f32 %v203, %v193
    %v206 = vadd.f32 %v203, %v195
    %v207 = vadd.f32 %v203, %v198
    %v208 = vadd.f32 %v203, %v200
    %v209 = vpack.c.bf16 %v205, %v205
    %v210 = vpack.c.bf16 %v206, %v206
    %v211 = vpack.c.bf16 %v207, %v207
    %v212 = vpack.c.bf16 %v208, %v208
    %vm213 = vsmask.f32 4368
    %vm214 = vmor %vm78, %vm213
    %v216 = vshrl.u32 %v209, 16
    %v218 = vrot.slane %v216, 7
    %v219 = vshll.u32 %v209, 16
    %v221 = vor.u32 %v218, %v219
    %v222 = vrot.slane %v218, 4
    %v224 = vshrl.u32 %v210, 16
    %v226 = vrot.slane %v224, 7
    %v227 = vshll.u32 %v210, 16
    %v229 = vor.u32 %v226, %v227
    %v230 = vsel %vm214, %v222, %v229
    %v231 = vrot.slane %v226, 4
    %v233 = vshrl.u32 %v211, 16
    %v235 = vrot.slane %v233, 7
    %v236 = vshll.u32 %v211, 16
    %v238 = vor.u32 %v235, %v236
    %v239 = vrot.slane %v235, 4
    %v241 = vshrl.u32 %v212, 16
    %v243 = vrot.slane %v241, 7
    %v244 = vshll.u32 %v212, 16
    %v246 = vor.u32 %v243, %v244
    %v247 = vsel %vm214, %v239, %v246
    %v248 = vrot.slane %v243, 4
    %vm255 = vcmask 1043456
    %vm256 = vmand %vm255, %vm86
    %v257 = vld [vmem:[#allocation3] sm:$0xf]
    %v258 = vsel %vm256, %v221, %v257
    %259 = vst [vmem:[#allocation3] sm:$0xf] %v258
    %260 = vst [vmem:[#allocation3 + $0x4] sm:$0xf] %v230
    %v261 = vld [vmem:[#allocation3 + $0x8] sm:$0x1]
    %v262 = vsel %vm79, %v231, %v261
    %263 = vst [vmem:[#allocation3 + $0x8] sm:$0x1] %v262
    %v264 = vld [vmem:[#allocation3 + $0xc] sm:$0xf]
    %v265 = vsel %vm256, %v238, %v264
    %266 = vst [vmem:[#allocation3 + $0xc] sm:$0xf] %v265
    %267 = vst [vmem:[#allocation3 + $0x10] sm:$0xf] %v247
    %v268 = vld [vmem:[#allocation3 + $0x14] sm:$0x1]
    %v269 = vsel %vm79, %v248, %v268
    %270 = vst [vmem:[#allocation3 + $0x14] sm:$0x1] %v269
    %v271 = vld [vmem:[#allocation3] sm:$0xf]
    %v272 = vld [vmem:[#allocation3 + $0x4] sm:$0xf]
    %v273 = vld [vmem:[#allocation3 + $0xc] sm:$0xf]
    %v274 = vld [vmem:[#allocation3 + $0x10] sm:$0xf]
    %275 = vst [vmem:[#allocation4] sm:$0xf] %v271
    %276 = vst [vmem:[#allocation4 + $0xc] sm:$0xf] %v272
    %277 = vst [vmem:[#allocation4 + $0x18] sm:$0xf] %v273
    %278 = vst [vmem:[#allocation4 + $0x24] sm:$0xf] %v274
    %v279 = vld [vmem:[#allocation3] sm:$0xf]
    %v280 = vld [vmem:[#allocation3 + $0x4] sm:$0xf]
    %v281 = vld [vmem:[#allocation3 + $0x8] sm:$0x1]
    %v282 = vld [vmem:[#allocation3 + $0xc] sm:$0xf]
    %v283 = vld [vmem:[#allocation3 + $0x10] sm:$0xf]
    %v284 = vld [vmem:[#allocation3 + $0x14] sm:$0x1]
    %vm285 = vsmask.f32 3328
    %vm286 = vsmask.f32 7440
    %vm287 = vmor %vm285, %vm286
    %v289 = vshrl.u32 %v279, 16
    %v291 = vrot.slane %v289, 4
    %v292 = vshll.u32 %v279, 16
    %v294 = vrot.slane %v292, 5
    %v295 = vor.u32 %v291, %v294
    %v296 = vrot.slane %v295, 4
    %v298 = vshll.u32 %v280, 16
    %v300 = vrot.slane %v298, 5
    %v301 = vsel %vm287, %v296, %v300
    %v302 = vshrl.u32 %v280, 16
    %v304 = vrot.slane %v302, 4
    %v305 = vor.u32 %v304, %v300
    %v306 = vrot.slane %v305, 4
    %v308 = vshll.u32 %v281, 16
    %v310 = vrot.slane %v308, 5
    %v311 = vsel %vm287, %v306, %v310
    %v313 = vshrl.u32 %v282, 16
    %v315 = vrot.slane %v313, 4
    %v316 = vshll.u32 %v282, 16
    %v318 = vrot.slane %v316, 5
    %v319 = vor.u32 %v315, %v318
    %v320 = vrot.slane %v319, 4
    %v322 = vshll.u32 %v283, 16
    %v324 = vrot.slane %v322, 5
    %v325 = vsel %vm287, %v320, %v324
    %v326 = vshrl.u32 %v283, 16
    %v328 = vrot.slane %v326, 4
    %v329 = vor.u32 %v328, %v324
    %v330 = vrot.slane %v329, 4
    %v332 = vshll.u32 %v284, 16
    %v334 = vrot.slane %v332, 5
    %v335 = vsel %vm287, %v330, %v334
    %340 = vst [vmem:[#allocation4 + $0x4] sm:$0xf] %v301
    %341 = vst [vmem:[#allocation4 + $0x10] sm:$0xf] %v311
    %342 = vst [vmem:[#allocation4 + $0x1c] sm:$0xf] %v325
    %343 = vst [vmem:[#allocation4 + $0x28] sm:$0xf] %v335
    %v344 = vld [vmem:[#allocation3] sm:$0xe]
    %v345 = vld [vmem:[#allocation3 + $0x4] sm:$0xf]
    %v346 = vld [vmem:[#allocation3 + $0x8] sm:$0x1]
    %v347 = vld [vmem:[#allocation3 + $0xc] sm:$0xe]
    %v348 = vld [vmem:[#allocation3 + $0x10] sm:$0xf]
    %v349 = vld [vmem:[#allocation3 + $0x14] sm:$0x1]
    %vm356 = vcmask 1042432
    %vm357 = vcmask 1046532
    %vm358 = vmor %vm356, %vm357
    %v359 = vrot.slane %v344, 5
    %v360 = vrot.slane %v359, 4
    %v361 = vrot.slane %v345, 5
    %v362 = vsel %vm358, %v360, %v361
    %v363 = vrot.slane %v361, 4
    %v364 = vrot.slane %v346, 5
    %v365 = vsel %vm358, %v363, %v364
    %v366 = vrot.slane %v347, 5
    %v367 = vrot.slane %v366, 4
    %v368 = vrot.slane %v348, 5
    %v369 = vsel %vm358, %v367, %v368
    %v370 = vrot.slane %v368, 4
    %v371 = vrot.slane %v349, 5
    %v372 = vsel %vm358, %v370, %v371
    %377 = vst [vmem:[#allocation4 + $0x8] sm:$0xf] %v362
    %378 = vst [vmem:[#allocation4 + $0x14] sm:$0xf] %v365
    %379 = vst [vmem:[#allocation4 + $0x20] sm:$0xf] %v369
    %380 = vst [vmem:[#allocation4 + $0x2c] sm:$0xf] %v372
    %v381 = vld [vmem:[%s4] sm:$0x1]
    %v382 = vld [vmem:[#allocation4] sm:$0xff]
    %v383 = vld [vmem:[#allocation4 + $0x8] sm:$0xf]
    %v384 = vld [vmem:[#allocation4 + $0xc] sm:$0xff]
    %v385 = vld [vmem:[#allocation4 + $0x14] sm:$0xf]
    %v386 = vld [vmem:[#allocation4 + $0x18] sm:$0xff]
    %v387 = vld [vmem:[#allocation4 + $0x20] sm:$0xf]
    %v388 = vld [vmem:[#allocation4 + $0x24] sm:$0xff]
    %v389 = vld [vmem:[#allocation4 + $0x2c] sm:$0xf]
    %v390 = vld [vmem:[%s3] sm:$0xf]
    %v391 = vld [vmem:[%s3 + $0x4] sm:$0xf]
    %v392 = vld [vmem:[%s3 + $0x8] sm:$0xf]
    %v393 = vld [vmem:[%s3 + $0xc] sm:$0xf]
    %v394 = vld [vmem:[%s3 + $0x10] sm:$0xf]
    %v395 = vld [vmem:[%s3 + $0x14] sm:$0xf]
    %v396 = vld [vmem:[%s3 + $0x18] sm:$0xf]
    %v397 = vld [vmem:[%s3 + $0x1c] sm:$0xf]
    %v398 = vld [vmem:[%s3 + $0x20] sm:$0xf]
    %v399 = vld [vmem:[%s3 + $0x24] sm:$0xf]
    %v400 = vld [vmem:[%s3 + $0x28] sm:$0xf]
    %v401 = vld [vmem:[%s3 + $0x2c] sm:$0xf]
    %v402 = vld [vmem:[%s3 + $0x30] sm:$0xf]
    %v403 = vld [vmem:[%s3 + $0x34] sm:$0xf]
    %v404 = vld [vmem:[%s3 + $0x38] sm:$0xf]
    %v405 = vld [vmem:[%s3 + $0x3c] sm:$0xf]
    %v406 = vld [vmem:[%s3 + $0x40] sm:$0xf]
    %v407 = vld [vmem:[%s3 + $0x44] sm:$0xf]
    %v408 = vld [vmem:[%s3 + $0x48] sm:$0xf]
    %v409 = vld [vmem:[%s3 + $0x4c] sm:$0xf]
    %v410 = vld [vmem:[%s3 + $0x50] sm:$0xf]
    %v411 = vld [vmem:[%s3 + $0x54] sm:$0xf]
    %v412 = vld [vmem:[%s3 + $0x58] sm:$0xf]
    %v413 = vld [vmem:[%s3 + $0x5c] sm:$0xf]
    %v414 = vld [vmem:[%s3 + $0x60] sm:$0xf]
    %v415 = vld [vmem:[%s3 + $0x64] sm:$0xf]
    %v416 = vld [vmem:[%s3 + $0x68] sm:$0xf]
    %v417 = vld [vmem:[%s3 + $0x6c] sm:$0xf]
    %v418 = vld [vmem:[%s3 + $0x70] sm:$0xf]
    %v419 = vld [vmem:[%s3 + $0x74] sm:$0xf]
    %v420 = vld [vmem:[%s3 + $0x78] sm:$0xf]
    %v421 = vld [vmem:[%s3 + $0x7c] sm:$0xf]
    %v422 = vld [vmem:[%s3 + $0x80] sm:$0xf]
    %v423 = vld [vmem:[%s3 + $0x84] sm:$0xf]
    %v424 = vld [vmem:[%s3 + $0x88] sm:$0xf]
    %v425 = vld [vmem:[%s3 + $0x8c] sm:$0xf]
    %v426 = vld [vmem:[%s3 + $0x90] sm:$0xf]
    %v427 = vld [vmem:[%s3 + $0x94] sm:$0xf]
    %v428 = vld [vmem:[%s3 + $0x98] sm:$0xf]
    %v429 = vld [vmem:[%s3 + $0x9c] sm:$0xf]
    %v430 = vld [vmem:[%s3 + $0xa0] sm:$0xf]
    %v431 = vld [vmem:[%s3 + $0xa4] sm:$0xf]
    %v432 = vld [vmem:[%s3 + $0xa8] sm:$0xf]
    %v433 = vld [vmem:[%s3 + $0xac] sm:$0xf]
    %v434 = vld [vmem:[%s3 + $0xb0] sm:$0xf]
    %v435 = vld [vmem:[%s3 + $0xb4] sm:$0xf]
    %v436 = vld [vmem:[%s3 + $0xb8] sm:$0xf]
    %v437 = vld [vmem:[%s3 + $0xbc] sm:$0xf]
    %v446 = vunpack.c.l.b16 %v382
    %v447 = vunpack.c.h.b16 %v382
    %v448 = vunpack.c.l.b16 %v383
    %v449 = vunpack.c.l.b16 %v384
    %v450 = vunpack.c.h.b16 %v384
    %v451 = vunpack.c.l.b16 %v385
    %v452 = vunpack.c.l.b16 %v386
    %v453 = vunpack.c.h.b16 %v386
    %v454 = vunpack.c.l.b16 %v387
    %v455 = vunpack.c.l.b16 %v388
    %v456 = vunpack.c.h.b16 %v388
    %v457 = vunpack.c.l.b16 %v389
    %v458 = vpack.c.b16 %v449, %v446
    %v459 = vpack.c.b16 %v450, %v447
    %v460 = vpack.c.b16 %v451, %v448
    %v461 = vpack.c.b16 %v455, %v452
    %v462 = vpack.c.b16 %v456, %v453
    %v463 = vpack.c.b16 %v457, %v454
    %v518 = vunpack.c.l.b16 %v390
    %v519 = vunpack.c.l.b16 %v391
    %v520 = vunpack.c.l.b16 %v392
    %v521 = vunpack.c.l.b16 %v393
    %v522 = vunpack.c.l.b16 %v394
    %v523 = vunpack.c.l.b16 %v395
    %v524 = vunpack.c.l.b16 %v396
    %v525 = vunpack.c.l.b16 %v397
    %v526 = vunpack.c.l.b16 %v398
    %v527 = vunpack.c.l.b16 %v399
    %v528 = vunpack.c.l.b16 %v400
    %v529 = vunpack.c.l.b16 %v401
    %v530 = vunpack.c.l.b16 %v402
    %v531 = vunpack.c.l.b16 %v403
    %v532 = vunpack.c.l.b16 %v404
    %v533 = vunpack.c.l.b16 %v405
    %v534 = vunpack.c.l.b16 %v406
    %v535 = vunpack.c.l.b16 %v407
    %v536 = vunpack.c.l.b16 %v408
    %v537 = vunpack.c.l.b16 %v409
    %v538 = vunpack.c.l.b16 %v410
    %v539 = vunpack.c.l.b16 %v411
    %v540 = vunpack.c.l.b16 %v412
    %v541 = vunpack.c.l.b16 %v413
    %v542 = vunpack.c.l.b16 %v414
    %v543 = vunpack.c.l.b16 %v415
    %v544 = vunpack.c.l.b16 %v416
    %v545 = vunpack.c.l.b16 %v417
    %v546 = vunpack.c.l.b16 %v418
    %v547 = vunpack.c.l.b16 %v419
    %v548 = vunpack.c.l.b16 %v420
    %v549 = vunpack.c.l.b16 %v421
    %v550 = vunpack.c.l.b16 %v422
    %v551 = vunpack.c.l.b16 %v423
    %v552 = vunpack.c.l.b16 %v424
    %v553 = vunpack.c.l.b16 %v425
    %v554 = vunpack.c.l.b16 %v426
    %v555 = vunpack.c.l.b16 %v427
    %v556 = vunpack.c.l.b16 %v428
    %v557 = vunpack.c.l.b16 %v429
    %v558 = vunpack.c.l.b16 %v430
    %v559 = vunpack.c.l.b16 %v431
    %v560 = vunpack.c.l.b16 %v432
    %v561 = vunpack.c.l.b16 %v433
    %v562 = vunpack.c.l.b16 %v434
    %v563 = vunpack.c.l.b16 %v435
    %v564 = vunpack.c.l.b16 %v436
    %v565 = vunpack.c.l.b16 %v437
    %v566 = vpack.c.b16 %v519, %v518
    %v567 = vpack.c.b16 %v521, %v520
    %v568 = vpack.c.b16 %v523, %v522
    %v569 = vpack.c.b16 %v525, %v524
    %v570 = vpack.c.b16 %v527, %v526
    %v571 = vpack.c.b16 %v529, %v528
    %v572 = vpack.c.b16 %v531, %v530
    %v573 = vpack.c.b16 %v533, %v532
    %v574 = vpack.c.b16 %v535, %v534
    %v575 = vpack.c.b16 %v537, %v536
    %v576 = vpack.c.b16 %v539, %v538
    %v577 = vpack.c.b16 %v541, %v540
    %v578 = vpack.c.b16 %v543, %v542
    %v579 = vpack.c.b16 %v545, %v544
    %v580 = vpack.c.b16 %v547, %v546
    %v581 = vpack.c.b16 %v549, %v548
    %v582 = vpack.c.b16 %v551, %v550
    %v583 = vpack.c.b16 %v553, %v552
    %v584 = vpack.c.b16 %v555, %v554
    %v585 = vpack.c.b16 %v557, %v556
    %v586 = vpack.c.b16 %v559, %v558
    %v587 = vpack.c.b16 %v561, %v560
    %v588 = vpack.c.b16 %v563, %v562
    %v589 = vpack.c.b16 %v565, %v564
    %614 = vmatpush.bf16.msra.mxu0 %v573
    %615 = vmatpush.bf16.msra.mxu0 %v572
    %616 = vmatpush.bf16.msra.mxu0 %v571
    %617 = vmatpush.bf16.msra.mxu0 %v570
    %618 = vmatpush.bf16.msra.mxu0 %v569
    %619 = vmatpush.bf16.msra.mxu0 %v568
    %620 = vmatpush.bf16.msra.mxu0 %v567
    %621 = vmatpush.bf16.msra.mxu0 %v566
    %622 = vmatmul.bf16.gmra.mxu0 %v458
    %v623 = vpop.f32.mrf.mxu0
    %v624 = vadd.f32 0.0, %v623
    %v625 = vpop.f32.mrf.mxu0
    %v626 = vadd.f32 0.0, %v625
    %627 = vmatmul.bf16.gmra.mxu0 %v461
    %v628 = vpop.f32.mrf.mxu0
    %v629 = vadd.f32 0.0, %v628
    %v630 = vpop.f32.mrf.mxu0
    %v631 = vadd.f32 0.0, %v630
    %632 = vdwg.mxu0
    %633 = vmatpush.bf16.msra.mxu0 %v581
    %634 = vmatpush.bf16.msra.mxu0 %v580
    %635 = vmatpush.bf16.msra.mxu0 %v579
    %636 = vmatpush.bf16.msra.mxu0 %v578
    %637 = vmatpush.bf16.msra.mxu0 %v577
    %638 = vmatpush.bf16.msra.mxu0 %v576
    %639 = vmatpush.bf16.msra.mxu0 %v575
    %640 = vmatpush.bf16.msra.mxu0 %v574
    %641 = vmatmul.bf16.gmra.mxu0 %v459
    %v642 = vpop.f32.mrf.mxu0
    %v643 = vadd.f32 %v624, %v642
    %v644 = vpop.f32.mrf.mxu0
    %v645 = vadd.f32 %v626, %v644
    %646 = vmatmul.bf16.gmra.mxu0 %v462
    %v647 = vpop.f32.mrf.mxu0
    %v648 = vadd.f32 %v629, %v647
    %v649 = vpop.f32.mrf.mxu0
    %v650 = vadd.f32 %v631, %v649
    %651 = vdwg.mxu0
    %652 = vmatpush.bf16.msra.mxu0 %v589
    %653 = vmatpush.bf16.msra.mxu0 %v588
    %654 = vmatpush.bf16.msra.mxu0 %v587
    %655 = vmatpush.bf16.msra.mxu0 %v586
    %656 = vmatpush.bf16.msra.mxu0 %v585
    %657 = vmatpush.bf16.msra.mxu0 %v584
    %658 = vmatpush.bf16.msra.mxu0 %v583
    %659 = vmatpush.bf16.msra.mxu0 %v582
    %660 = vmatmul.bf16.gmra.mxu0 %v460
    %v661 = vpop.f32.mrf.mxu0
    %v662 = vadd.f32 %v643, %v661
    %v663 = vpop.f32.mrf.mxu0
    %v664 = vadd.f32 %v645, %v663
    %665 = vmatmul.bf16.gmra.mxu0 %v463
    %v666 = vpop.f32.mrf.mxu0
    %v667 = vadd.f32 %v648, %v666
    %v668 = vpop.f32.mrf.mxu0
    %v669 = vadd.f32 %v650, %v668
    %670 = vdwg.mxu0
    %v672 = vperm.slane %v381, 0
    %v674 = vadd.f32 %v672, %v662
    %v675 = vadd.f32 %v672, %v664
    %v676 = vadd.f32 %v672, %v667
    %v677 = vadd.f32 %v672, %v669
    %vm678 = vcmp.gt.f32.partialorder %v674, 0.0
    %vm679 = vcmp.gt.f32.partialorder %v675, 0.0
    %vm680 = vcmp.gt.f32.partialorder %v676, 0.0
    %vm681 = vcmp.gt.f32.partialorder %v677, 0.0
    %v682 = vmul.f32 %v674, 0.2
    %v683 = vmul.f32 %v675, 0.2
    %v684 = vmul.f32 %v676, 0.2
    %v685 = vmul.f32 %v677, 0.2
    %v686 = vsel %vm678, %v674, %v682
    %v687 = vsel %vm679, %v675, %v683
    %v688 = vsel %vm680, %v676, %v684
    %v689 = vsel %vm681, %v677, %v685
    %690 = vst [vmem:[%s13] sm:$0xff] %v686
    %691 = vst [vmem:[%s13 + $0x8] sm:$0xff] %v687
    %692 = vst [vmem:[%s13 + $0x30] sm:$0xff] %v688
    %693 = vst [vmem:[%s13 + $0x38] sm:$0xff] %v689
    %v694 = vpack.c.bf16 %v686, %v686
    %v695 = vpack.c.bf16 %v687, %v687
    %v696 = vpack.c.bf16 %v688, %v688
    %v697 = vpack.c.bf16 %v689, %v689
    %698 = vst [vmem:[#allocation2 + $0x4] sm:$0xf] %v694
    %699 = vst [vmem:[#allocation2 + $0x10] sm:$0xf] %v695
    %700 = vst [vmem:[#allocation2 + $0x1c] sm:$0xf] %v696
    %701 = vst [vmem:[#allocation2 + $0x28] sm:$0xf] %v697
    %v702 = vld [vmem:[%s6] sm:$0x1]
    %v703 = vld [vmem:[#allocation2] sm:$0xff]
    %v704 = vld [vmem:[#allocation2 + $0xc] sm:$0xff]
    %v705 = vld [vmem:[#allocation2 + $0x18] sm:$0xff]
    %v706 = vld [vmem:[#allocation2 + $0x24] sm:$0xff]
    %v707 = vld [vmem:[#allocation7] sm:$0xf]
    %v708 = vld [vmem:[#allocation7 + $0x4] sm:$0xf]
    %v709 = vld [vmem:[#allocation7 + $0x8] sm:$0xf]
    %v710 = vld [vmem:[#allocation7 + $0xc] sm:$0xf]
    %v711 = vld [vmem:[#allocation7 + $0x10] sm:$0xf]
    %v712 = vld [vmem:[#allocation7 + $0x14] sm:$0xf]
    %v713 = vld [vmem:[#allocation7 + $0x18] sm:$0xf]
    %v714 = vld [vmem:[#allocation7 + $0x1c] sm:$0xf]
    %v715 = vld [vmem:[#allocation7 + $0x20] sm:$0xf]
    %v716 = vld [vmem:[#allocation7 + $0x24] sm:$0xf]
    %v717 = vld [vmem:[#allocation7 + $0x28] sm:$0xf]
    %v718 = vld [vmem:[#allocation7 + $0x2c] sm:$0xf]
    %v719 = vld [vmem:[#allocation7 + $0x30] sm:$0xf]
    %v720 = vld [vmem:[#allocation7 + $0x34] sm:$0xf]
    %v721 = vld [vmem:[#allocation7 + $0x38] sm:$0xf]
    %v722 = vld [vmem:[#allocation7 + $0x3c] sm:$0xf]
    %v723 = vld [vmem:[#allocation7 + $0x40] sm:$0xf]
    %v724 = vld [vmem:[#allocation7 + $0x44] sm:$0xf]
    %v725 = vld [vmem:[#allocation7 + $0x48] sm:$0xf]
    %v726 = vld [vmem:[#allocation7 + $0x4c] sm:$0xf]
    %v727 = vld [vmem:[#allocation7 + $0x50] sm:$0xf]
    %v728 = vld [vmem:[#allocation7 + $0x54] sm:$0xf]
    %v729 = vld [vmem:[#allocation7 + $0x58] sm:$0xf]
    %v730 = vld [vmem:[#allocation7 + $0x5c] sm:$0xf]
    %v731 = vld [vmem:[#allocation7 + $0x60] sm:$0xf]
    %v732 = vld [vmem:[#allocation7 + $0x64] sm:$0xf]
    %v733 = vld [vmem:[#allocation7 + $0x68] sm:$0xf]
    %v734 = vld [vmem:[#allocation7 + $0x6c] sm:$0xf]
    %v735 = vld [vmem:[#allocation7 + $0x70] sm:$0xf]
    %v736 = vld [vmem:[#allocation7 + $0x74] sm:$0xf]
    %v737 = vld [vmem:[#allocation7 + $0x78] sm:$0xf]
    %v738 = vld [vmem:[#allocation7 + $0x7c] sm:$0xf]
    %v743 = vunpack.c.l.b16 %v703
    %v744 = vunpack.c.h.b16 %v703
    %v745 = vunpack.c.l.b16 %v704
    %v746 = vunpack.c.h.b16 %v704
    %v747 = vunpack.c.l.b16 %v705
    %v748 = vunpack.c.h.b16 %v705
    %v749 = vunpack.c.l.b16 %v706
    %v750 = vunpack.c.h.b16 %v706
    %v751 = vpack.c.b16 %v745, %v743
    %v752 = vpack.c.b16 %v746, %v744
    %v753 = vpack.c.b16 %v749, %v747
    %v754 = vpack.c.b16 %v750, %v748
    %v791 = vunpack.c.l.b16 %v707
    %v792 = vunpack.c.l.b16 %v708
    %v793 = vunpack.c.l.b16 %v709
    %v794 = vunpack.c.l.b16 %v710
    %v795 = vunpack.c.l.b16 %v711
    %v796 = vunpack.c.l.b16 %v712
    %v797 = vunpack.c.l.b16 %v713
    %v798 = vunpack.c.l.b16 %v714
    %v799 = vunpack.c.l.b16 %v715
    %v800 = vunpack.c.l.b16 %v716
    %v801 = vunpack.c.l.b16 %v717
    %v802 = vunpack.c.l.b16 %v718
    %v803 = vunpack.c.l.b16 %v719
    %v804 = vunpack.c.l.b16 %v720
    %v805 = vunpack.c.l.b16 %v721
    %v806 = vunpack.c.l.b16 %v722
    %v807 = vunpack.c.l.b16 %v723
    %v808 = vunpack.c.l.b16 %v724
    %v809 = vunpack.c.l.b16 %v725
    %v810 = vunpack.c.l.b16 %v726
    %v811 = vunpack.c.l.b16 %v727
    %v812 = vunpack.c.l.b16 %v728
    %v813 = vunpack.c.l.b16 %v729
    %v814 = vunpack.c.l.b16 %v730
    %v815 = vunpack.c.l.b16 %v731
    %v816 = vunpack.c.l.b16 %v732
    %v817 = vunpack.c.l.b16 %v733
    %v818 = vunpack.c.l.b16 %v734
    %v819 = vunpack.c.l.b16 %v735
    %v820 = vunpack.c.l.b16 %v736
    %v821 = vunpack.c.l.b16 %v737
    %v822 = vunpack.c.l.b16 %v738
    %v823 = vpack.c.b16 %v792, %v791
    %v824 = vpack.c.b16 %v794, %v793
    %v825 = vpack.c.b16 %v796, %v795
    %v826 = vpack.c.b16 %v798, %v797
    %v827 = vpack.c.b16 %v800, %v799
    %v828 = vpack.c.b16 %v802, %v801
    %v829 = vpack.c.b16 %v804, %v803
    %v830 = vpack.c.b16 %v806, %v805
    %v831 = vpack.c.b16 %v808, %v807
    %v832 = vpack.c.b16 %v810, %v809
    %v833 = vpack.c.b16 %v812, %v811
    %v834 = vpack.c.b16 %v814, %v813
    %v835 = vpack.c.b16 %v816, %v815
    %v836 = vpack.c.b16 %v818, %v817
    %v837 = vpack.c.b16 %v820, %v819
    %v838 = vpack.c.b16 %v822, %v821
    %855 = vmatpush.bf16.msra.mxu0 %v830
    %856 = vmatpush.bf16.msra.mxu0 %v829
    %857 = vmatpush.bf16.msra.mxu0 %v828
    %858 = vmatpush.bf16.msra.mxu0 %v827
    %859 = vmatpush.bf16.msra.mxu0 %v826
    %860 = vmatpush.bf16.msra.mxu0 %v825
    %861 = vmatpush.bf16.msra.mxu0 %v824
    %862 = vmatpush.bf16.msra.mxu0 %v823
    %863 = vmatmul.bf16.gmra.mxu0 %v751
    %v864 = vpop.f32.mrf.mxu0
    %v865 = vadd.f32 0.0, %v864
    %v866 = vpop.f32.mrf.mxu0
    %v867 = vadd.f32 0.0, %v866
    %868 = vmatmul.bf16.gmra.mxu0 %v753
    %v869 = vpop.f32.mrf.mxu0
    %v870 = vadd.f32 0.0, %v869
    %v871 = vpop.f32.mrf.mxu0
    %v872 = vadd.f32 0.0, %v871
    %873 = vdwg.mxu0
    %874 = vmatpush.bf16.msra.mxu0 %v838
    %875 = vmatpush.bf16.msra.mxu0 %v837
    %876 = vmatpush.bf16.msra.mxu0 %v836
    %877 = vmatpush.bf16.msra.mxu0 %v835
    %878 = vmatpush.bf16.msra.mxu0 %v834
    %879 = vmatpush.bf16.msra.mxu0 %v833
    %880 = vmatpush.bf16.msra.mxu0 %v832
    %881 = vmatpush.bf16.msra.mxu0 %v831
    %882 = vmatmul.bf16.gmra.mxu0 %v752
    %v883 = vpop.f32.mrf.mxu0
    %v884 = vadd.f32 %v865, %v883
    %v885 = vpop.f32.mrf.mxu0
    %v886 = vadd.f32 %v867, %v885
    %887 = vmatmul.bf16.gmra.mxu0 %v754
    %v888 = vpop.f32.mrf.mxu0
    %v889 = vadd.f32 %v870, %v888
    %v890 = vpop.f32.mrf.mxu0
    %v891 = vadd.f32 %v872, %v890
    %892 = vdwg.mxu0
    %v894 = vperm.slane %v702, 0
    %v896 = vadd.f32 %v894, %v884
    %v897 = vadd.f32 %v894, %v886
    %v898 = vadd.f32 %v894, %v889
    %v899 = vadd.f32 %v894, %v891
    %v900 = vpack.c.bf16 %v896, %v896
    %v901 = vpack.c.bf16 %v897, %v897
    %v902 = vpack.c.bf16 %v898, %v898
    %v903 = vpack.c.bf16 %v899, %v899
    %v905 = vshrl.u32 %v900, 16
    %v907 = vrot.slane %v905, 7
    %v908 = vshll.u32 %v900, 16
    %v910 = vor.u32 %v907, %v908
    %v911 = vrot.slane %v907, 4
    %v913 = vshrl.u32 %v901, 16
    %v915 = vrot.slane %v913, 7
    %v916 = vshll.u32 %v901, 16
    %v918 = vor.u32 %v915, %v916
    %v919 = vsel %vm214, %v911, %v918
    %v920 = vrot.slane %v915, 4
    %v922 = vshrl.u32 %v902, 16
    %v924 = vrot.slane %v922, 7
    %v925 = vshll.u32 %v902, 16
    %v927 = vor.u32 %v924, %v925
    %v928 = vrot.slane %v924, 4
    %v930 = vshrl.u32 %v903, 16
    %v932 = vrot.slane %v930, 7
    %v933 = vshll.u32 %v903, 16
    %v935 = vor.u32 %v932, %v933
    %v936 = vsel %vm214, %v928, %v935
    %v937 = vrot.slane %v932, 4
    %v944 = vld [vmem:[#allocation3] sm:$0xf]
    %v945 = vsel %vm256, %v910, %v944
    %946 = vst [vmem:[#allocation3] sm:$0xf] %v945
    %947 = vst [vmem:[#allocation3 + $0x4] sm:$0xf] %v919
    %v948 = vld [vmem:[#allocation3 + $0x8] sm:$0x1]
    %v949 = vsel %vm79, %v920, %v948
    %950 = vst [vmem:[#allocation3 + $0x8] sm:$0x1] %v949
    %v951 = vld [vmem:[#allocation3 + $0xc] sm:$0xf]
    %v952 = vsel %vm256, %v927, %v951
    %953 = vst [vmem:[#allocation3 + $0xc] sm:$0xf] %v952
    %954 = vst [vmem:[#allocation3 + $0x10] sm:$0xf] %v936
    %v955 = vld [vmem:[#allocation3 + $0x14] sm:$0x1]
    %v956 = vsel %vm79, %v937, %v955
    %957 = vst [vmem:[#allocation3 + $0x14] sm:$0x1] %v956
    %v958 = vld [vmem:[#allocation3] sm:$0xf]
    %v959 = vld [vmem:[#allocation3 + $0x4] sm:$0xf]
    %v960 = vld [vmem:[#allocation3 + $0xc] sm:$0xf]
    %v961 = vld [vmem:[#allocation3 + $0x10] sm:$0xf]
    %962 = vst [vmem:[#allocation4] sm:$0xf] %v958
    %963 = vst [vmem:[#allocation4 + $0xc] sm:$0xf] %v959
    %964 = vst [vmem:[#allocation4 + $0x18] sm:$0xf] %v960
    %965 = vst [vmem:[#allocation4 + $0x24] sm:$0xf] %v961
    %v966 = vld [vmem:[#allocation3] sm:$0xf]
    %v967 = vld [vmem:[#allocation3 + $0x4] sm:$0xf]
    %v968 = vld [vmem:[#allocation3 + $0x8] sm:$0x1]
    %v969 = vld [vmem:[#allocation3 + $0xc] sm:$0xf]
    %v970 = vld [vmem:[#allocation3 + $0x10] sm:$0xf]
    %v971 = vld [vmem:[#allocation3 + $0x14] sm:$0x1]
    %v973 = vshrl.u32 %v966, 16
    %v975 = vrot.slane %v973, 4
    %v976 = vshll.u32 %v966, 16
    %v978 = vrot.slane %v976, 5
    %v979 = vor.u32 %v975, %v978
    %v980 = vrot.slane %v979, 4
    %v982 = vshll.u32 %v967, 16
    %v984 = vrot.slane %v982, 5
    %v985 = vsel %vm287, %v980, %v984
    %v986 = vshrl.u32 %v967, 16
    %v988 = vrot.slane %v986, 4
    %v989 = vor.u32 %v988, %v984
    %v990 = vrot.slane %v989, 4
    %v992 = vshll.u32 %v968, 16
    %v994 = vrot.slane %v992, 5
    %v995 = vsel %vm287, %v990, %v994
    %v997 = vshrl.u32 %v969, 16
    %v999 = vrot.slane %v997, 4
    %v1000 = vshll.u32 %v969, 16
    %v1002 = vrot.slane %v1000, 5
    %v1003 = vor.u32 %v999, %v1002
    %v1004 = vrot.slane %v1003, 4
    %v1006 = vshll.u32 %v970, 16
    %v1008 = vrot.slane %v1006, 5
    %v1009 = vsel %vm287, %v1004, %v1008
    %v1010 = vshrl.u32 %v970, 16
    %v1012 = vrot.slane %v1010, 4
    %v1013 = vor.u32 %v1012, %v1008
    %v1014 = vrot.slane %v1013, 4
    %v1016 = vshll.u32 %v971, 16
    %v1018 = vrot.slane %v1016, 5
    %v1019 = vsel %vm287, %v1014, %v1018
    %1024 = vst [vmem:[#allocation4 + $0x4] sm:$0xf] %v985
    %1025 = vst [vmem:[#allocation4 + $0x10] sm:$0xf] %v995
    %1026 = vst [vmem:[#allocation4 + $0x1c] sm:$0xf] %v1009
    %1027 = vst [vmem:[#allocation4 + $0x28] sm:$0xf] %v1019
    %v1028 = vld [vmem:[#allocation3] sm:$0xe]
    %v1029 = vld [vmem:[#allocation3 + $0x4] sm:$0xf]
    %v1030 = vld [vmem:[#allocation3 + $0x8] sm:$0x1]
    %v1031 = vld [vmem:[#allocation3 + $0xc] sm:$0xe]
    %v1032 = vld [vmem:[#allocation3 + $0x10] sm:$0xf]
    %v1033 = vld [vmem:[#allocation3 + $0x14] sm:$0x1]
    %v1040 = vrot.slane %v1028, 5
    %v1041 = vrot.slane %v1040, 4
    %v1042 = vrot.slane %v1029, 5
    %v1043 = vsel %vm358, %v1041, %v1042
    %v1044 = vrot.slane %v1042, 4
    %v1045 = vrot.slane %v1030, 5
    %v1046 = vsel %vm358, %v1044, %v1045
    %v1047 = vrot.slane %v1031, 5
    %v1048 = vrot.slane %v1047, 4
    %v1049 = vrot.slane %v1032, 5
    %v1050 = vsel %vm358, %v1048, %v1049
    %v1051 = vrot.slane %v1049, 4
    %v1052 = vrot.slane %v1033, 5
    %v1053 = vsel %vm358, %v1051, %v1052
    %1058 = vst [vmem:[#allocation4 + $0x8] sm:$0xf] %v1043
    %1059 = vst [vmem:[#allocation4 + $0x14] sm:$0xf] %v1046
    %1060 = vst [vmem:[#allocation4 + $0x20] sm:$0xf] %v1050
    %1061 = vst [vmem:[#allocation4 + $0x2c] sm:$0xf] %v1053
    %v1062 = vld [vmem:[%s8] sm:$0x1]
    %v1063 = vld [vmem:[#allocation4] sm:$0xff]
    %v1064 = vld [vmem:[#allocation4 + $0x8] sm:$0xf]
    %v1065 = vld [vmem:[#allocation4 + $0xc] sm:$0xff]
    %v1066 = vld [vmem:[#allocation4 + $0x14] sm:$0xf]
    %v1067 = vld [vmem:[#allocation4 + $0x18] sm:$0xff]
    %v1068 = vld [vmem:[#allocation4 + $0x20] sm:$0xf]
    %v1069 = vld [vmem:[#allocation4 + $0x24] sm:$0xff]
    %v1070 = vld [vmem:[#allocation4 + $0x2c] sm:$0xf]
    %v1071 = vld [vmem:[%s7] sm:$0xf]
    %v1072 = vld [vmem:[%s7 + $0x4] sm:$0xf]
    %v1073 = vld [vmem:[%s7 + $0x8] sm:$0xf]
    %v1074 = vld [vmem:[%s7 + $0xc] sm:$0xf]
    %v1075 = vld [vmem:[%s7 + $0x10] sm:$0xf]
    %v1076 = vld [vmem:[%s7 + $0x14] sm:$0xf]
    %v1077 = vld [vmem:[%s7 + $0x18] sm:$0xf]
    %v1078 = vld [vmem:[%s7 + $0x1c] sm:$0xf]
    %v1079 = vld [vmem:[%s7 + $0x20] sm:$0xf]
    %v1080 = vld [vmem:[%s7 + $0x24] sm:$0xf]
    %v1081 = vld [vmem:[%s7 + $0x28] sm:$0xf]
    %v1082 = vld [vmem:[%s7 + $0x2c] sm:$0xf]
    %v1083 = vld [vmem:[%s7 + $0x30] sm:$0xf]
    %v1084 = vld [vmem:[%s7 + $0x34] sm:$0xf]
    %v1085 = vld [vmem:[%s7 + $0x38] sm:$0xf]
    %v1086 = vld [vmem:[%s7 + $0x3c] sm:$0xf]
    %v1087 = vld [vmem:[%s7 + $0x40] sm:$0xf]
    %v1088 = vld [vmem:[%s7 + $0x44] sm:$0xf]
    %v1089 = vld [vmem:[%s7 + $0x48] sm:$0xf]
    %v1090 = vld [vmem:[%s7 + $0x4c] sm:$0xf]
    %v1091 = vld [vmem:[%s7 + $0x50] sm:$0xf]
    %v1092 = vld [vmem:[%s7 + $0x54] sm:$0xf]
    %v1093 = vld [vmem:[%s7 + $0x58] sm:$0xf]
    %v1094 = vld [vmem:[%s7 + $0x5c] sm:$0xf]
    %v1095 = vld [vmem:[%s7 + $0x60] sm:$0xf]
    %v1096 = vld [vmem:[%s7 + $0x64] sm:$0xf]
    %v1097 = vld [vmem:[%s7 + $0x68] sm:$0xf]
    %v1098 = vld [vmem:[%s7 + $0x6c] sm:$0xf]
    %v1099 = vld [vmem:[%s7 + $0x70] sm:$0xf]
    %v1100 = vld [vmem:[%s7 + $0x74] sm:$0xf]
    %v1101 = vld [vmem:[%s7 + $0x78] sm:$0xf]
    %v1102 = vld [vmem:[%s7 + $0x7c] sm:$0xf]
    %v1103 = vld [vmem:[%s7 + $0x80] sm:$0xf]
    %v1104 = vld [vmem:[%s7 + $0x84] sm:$0xf]
    %v1105 = vld [vmem:[%s7 + $0x88] sm:$0xf]
    %v1106 = vld [vmem:[%s7 + $0x8c] sm:$0xf]
    %v1107 = vld [vmem:[%s7 + $0x90] sm:$0xf]
    %v1108 = vld [vmem:[%s7 + $0x94] sm:$0xf]
    %v1109 = vld [vmem:[%s7 + $0x98] sm:$0xf]
    %v1110 = vld [vmem:[%s7 + $0x9c] sm:$0xf]
    %v1111 = vld [vmem:[%s7 + $0xa0] sm:$0xf]
    %v1112 = vld [vmem:[%s7 + $0xa4] sm:$0xf]
    %v1113 = vld [vmem:[%s7 + $0xa8] sm:$0xf]
    %v1114 = vld [vmem:[%s7 + $0xac] sm:$0xf]
    %v1115 = vld [vmem:[%s7 + $0xb0] sm:$0xf]
    %v1116 = vld [vmem:[%s7 + $0xb4] sm:$0xf]
    %v1117 = vld [vmem:[%s7 + $0xb8] sm:$0xf]
    %v1118 = vld [vmem:[%s7 + $0xbc] sm:$0xf]
    %v1127 = vunpack.c.l.b16 %v1063
    %v1128 = vunpack.c.h.b16 %v1063
    %v1129 = vunpack.c.l.b16 %v1064
    %v1130 = vunpack.c.l.b16 %v1065
    %v1131 = vunpack.c.h.b16 %v1065
    %v1132 = vunpack.c.l.b16 %v1066
    %v1133 = vunpack.c.l.b16 %v1067
    %v1134 = vunpack.c.h.b16 %v1067
    %v1135 = vunpack.c.l.b16 %v1068
    %v1136 = vunpack.c.l.b16 %v1069
    %v1137 = vunpack.c.h.b16 %v1069
    %v1138 = vunpack.c.l.b16 %v1070
    %v1139 = vpack.c.b16 %v1130, %v1127
    %v1140 = vpack.c.b16 %v1131, %v1128
    %v1141 = vpack.c.b16 %v1132, %v1129
    %v1142 = vpack.c.b16 %v1136, %v1133
    %v1143 = vpack.c.b16 %v1137, %v1134
    %v1144 = vpack.c.b16 %v1138, %v1135
    %v1199 = vunpack.c.l.b16 %v1071
    %v1200 = vunpack.c.l.b16 %v1072
    %v1201 = vunpack.c.l.b16 %v1073
    %v1202 = vunpack.c.l.b16 %v1074
    %v1203 = vunpack.c.l.b16 %v1075
    %v1204 = vunpack.c.l.b16 %v1076
    %v1205 = vunpack.c.l.b16 %v1077
    %v1206 = vunpack.c.l.b16 %v1078
    %v1207 = vunpack.c.l.b16 %v1079
    %v1208 = vunpack.c.l.b16 %v1080
    %v1209 = vunpack.c.l.b16 %v1081
    %v1210 = vunpack.c.l.b16 %v1082
    %v1211 = vunpack.c.l.b16 %v1083
    %v1212 = vunpack.c.l.b16 %v1084
    %v1213 = vunpack.c.l.b16 %v1085
    %v1214 = vunpack.c.l.b16 %v1086
    %v1215 = vunpack.c.l.b16 %v1087
    %v1216 = vunpack.c.l.b16 %v1088
    %v1217 = vunpack.c.l.b16 %v1089
    %v1218 = vunpack.c.l.b16 %v1090
    %v1219 = vunpack.c.l.b16 %v1091
    %v1220 = vunpack.c.l.b16 %v1092
    %v1221 = vunpack.c.l.b16 %v1093
    %v1222 = vunpack.c.l.b16 %v1094
    %v1223 = vunpack.c.l.b16 %v1095
    %v1224 = vunpack.c.l.b16 %v1096
    %v1225 = vunpack.c.l.b16 %v1097
    %v1226 = vunpack.c.l.b16 %v1098
    %v1227 = vunpack.c.l.b16 %v1099
    %v1228 = vunpack.c.l.b16 %v1100
    %v1229 = vunpack.c.l.b16 %v1101
    %v1230 = vunpack.c.l.b16 %v1102
    %v1231 = vunpack.c.l.b16 %v1103
    %v1232 = vunpack.c.l.b16 %v1104
    %v1233 = vunpack.c.l.b16 %v1105
    %v1234 = vunpack.c.l.b16 %v1106
    %v1235 = vunpack.c.l.b16 %v1107
    %v1236 = vunpack.c.l.b16 %v1108
    %v1237 = vunpack.c.l.b16 %v1109
    %v1238 = vunpack.c.l.b16 %v1110
    %v1239 = vunpack.c.l.b16 %v1111
    %v1240 = vunpack.c.l.b16 %v1112
    %v1241 = vunpack.c.l.b16 %v1113
    %v1242 = vunpack.c.l.b16 %v1114
    %v1243 = vunpack.c.l.b16 %v1115
    %v1244 = vunpack.c.l.b16 %v1116
    %v1245 = vunpack.c.l.b16 %v1117
    %v1246 = vunpack.c.l.b16 %v1118
    %v1247 = vpack.c.b16 %v1200, %v1199
    %v1248 = vpack.c.b16 %v1202, %v1201
    %v1249 = vpack.c.b16 %v1204, %v1203
    %v1250 = vpack.c.b16 %v1206, %v1205
    %v1251 = vpack.c.b16 %v1208, %v1207
    %v1252 = vpack.c.b16 %v1210, %v1209
    %v1253 = vpack.c.b16 %v1212, %v1211
    %v1254 = vpack.c.b16 %v1214, %v1213
    %v1255 = vpack.c.b16 %v1216, %v1215
    %v1256 = vpack.c.b16 %v1218, %v1217
    %v1257 = vpack.c.b16 %v1220, %v1219
    %v1258 = vpack.c.b16 %v1222, %v1221
    %v1259 = vpack.c.b16 %v1224, %v1223
    %v1260 = vpack.c.b16 %v1226, %v1225
    %v1261 = vpack.c.b16 %v1228, %v1227
    %v1262 = vpack.c.b16 %v1230, %v1229
    %v1263 = vpack.c.b16 %v1232, %v1231
    %v1264 = vpack.c.b16 %v1234, %v1233
    %v1265 = vpack.c.b16 %v1236, %v1235
    %v1266 = vpack.c.b16 %v1238, %v1237
    %v1267 = vpack.c.b16 %v1240, %v1239
    %v1268 = vpack.c.b16 %v1242, %v1241
    %v1269 = vpack.c.b16 %v1244, %v1243
    %v1270 = vpack.c.b16 %v1246, %v1245
    %1295 = vmatpush.bf16.msra.mxu0 %v1254
    %1296 = vmatpush.bf16.msra.mxu0 %v1253
    %1297 = vmatpush.bf16.msra.mxu0 %v1252
    %1298 = vmatpush.bf16.msra.mxu0 %v1251
    %1299 = vmatpush.bf16.msra.mxu0 %v1250
    %1300 = vmatpush.bf16.msra.mxu0 %v1249
    %1301 = vmatpush.bf16.msra.mxu0 %v1248
    %1302 = vmatpush.bf16.msra.mxu0 %v1247
    %1303 = vmatmul.bf16.gmra.mxu0 %v1139
    %v1304 = vpop.f32.mrf.mxu0
    %v1305 = vadd.f32 0.0, %v1304
    %v1306 = vpop.f32.mrf.mxu0
    %v1307 = vadd.f32 0.0, %v1306
    %1308 = vmatmul.bf16.gmra.mxu0 %v1142
    %v1309 = vpop.f32.mrf.mxu0
    %v1310 = vadd.f32 0.0, %v1309
    %v1311 = vpop.f32.mrf.mxu0
    %v1312 = vadd.f32 0.0, %v1311
    %1313 = vdwg.mxu0
    %1314 = vmatpush.bf16.msra.mxu0 %v1262
    %1315 = vmatpush.bf16.msra.mxu0 %v1261
    %1316 = vmatpush.bf16.msra.mxu0 %v1260
    %1317 = vmatpush.bf16.msra.mxu0 %v1259
    %1318 = vmatpush.bf16.msra.mxu0 %v1258
    %1319 = vmatpush.bf16.msra.mxu0 %v1257
    %1320 = vmatpush.bf16.msra.mxu0 %v1256
    %1321 = vmatpush.bf16.msra.mxu0 %v1255
    %1322 = vmatmul.bf16.gmra.mxu0 %v1140
    %v1323 = vpop.f32.mrf.mxu0
    %v1324 = vadd.f32 %v1305, %v1323
    %v1325 = vpop.f32.mrf.mxu0
    %v1326 = vadd.f32 %v1307, %v1325
    %1327 = vmatmul.bf16.gmra.mxu0 %v1143
    %v1328 = vpop.f32.mrf.mxu0
    %v1329 = vadd.f32 %v1310, %v1328
    %v1330 = vpop.f32.mrf.mxu0
    %v1331 = vadd.f32 %v1312, %v1330
    %1332 = vdwg.mxu0
    %1333 = vmatpush.bf16.msra.mxu0 %v1270
    %1334 = vmatpush.bf16.msra.mxu0 %v1269
    %1335 = vmatpush.bf16.msra.mxu0 %v1268
    %1336 = vmatpush.bf16.msra.mxu0 %v1267
    %1337 = vmatpush.bf16.msra.mxu0 %v1266
    %1338 = vmatpush.bf16.msra.mxu0 %v1265
    %1339 = vmatpush.bf16.msra.mxu0 %v1264
    %1340 = vmatpush.bf16.msra.mxu0 %v1263
    %1341 = vmatmul.bf16.gmra.mxu0 %v1141
    %v1342 = vpop.f32.mrf.mxu0
    %v1343 = vadd.f32 %v1324, %v1342
    %v1344 = vpop.f32.mrf.mxu0
    %v1345 = vadd.f32 %v1326, %v1344
    %1346 = vmatmul.bf16.gmra.mxu0 %v1144
    %v1347 = vpop.f32.mrf.mxu0
    %v1348 = vadd.f32 %v1329, %v1347
    %v1349 = vpop.f32.mrf.mxu0
    %v1350 = vadd.f32 %v1331, %v1349
    %1351 = vdwg.mxu0
    %v1353 = vperm.slane %v1062, 0
    %v1355 = vadd.f32 %v1353, %v1343
    %v1356 = vadd.f32 %v1353, %v1345
    %v1357 = vadd.f32 %v1353, %v1348
    %v1358 = vadd.f32 %v1353, %v1350
    %vm1359 = vcmp.gt.f32.partialorder %v1355, 0.0
    %vm1360 = vcmp.gt.f32.partialorder %v1356, 0.0
    %vm1361 = vcmp.gt.f32.partialorder %v1357, 0.0
    %vm1362 = vcmp.gt.f32.partialorder %v1358, 0.0
    %v1363 = vmul.f32 %v1355, 0.2
    %v1364 = vmul.f32 %v1356, 0.2
    %v1365 = vmul.f32 %v1357, 0.2
    %v1366 = vmul.f32 %v1358, 0.2
    %v1367 = vsel %vm1359, %v1355, %v1363
    %v1368 = vsel %vm1360, %v1356, %v1364
    %v1369 = vsel %vm1361, %v1357, %v1365
    %v1370 = vsel %vm1362, %v1358, %v1366
    %s1371 = scalar_lea.vmem %s13, 16
    %1372 = vst [vmem:[%s1371] sm:$0xff] %v1367
    %1373 = vst [vmem:[%s1371 + $0x8] sm:$0xff] %v1368
    %1374 = vst [vmem:[%s1371 + $0x30] sm:$0xff] %v1369
    %1375 = vst [vmem:[%s1371 + $0x38] sm:$0xff] %v1370
    %v1376 = vpack.c.bf16 %v1367, %v1367
    %v1377 = vpack.c.bf16 %v1368, %v1368
    %v1378 = vpack.c.bf16 %v1369, %v1369
    %v1379 = vpack.c.bf16 %v1370, %v1370
    %1380 = vst [vmem:[#allocation2 + $0x8] sm:$0xf] %v1376
    %1381 = vst [vmem:[#allocation2 + $0x14] sm:$0xf] %v1377
    %1382 = vst [vmem:[#allocation2 + $0x20] sm:$0xf] %v1378
    %1383 = vst [vmem:[#allocation2 + $0x2c] sm:$0xf] %v1379
    %v1384 = vld [vmem:[%s10] sm:$0x1]
    %v1385 = vld [vmem:[#allocation2] sm:$0xff]
    %v1386 = vld [vmem:[#allocation2 + $0x8] sm:$0xf]
    %v1387 = vld [vmem:[#allocation2 + $0xc] sm:$0xff]
    %v1388 = vld [vmem:[#allocation2 + $0x14] sm:$0xf]
    %v1389 = vld [vmem:[#allocation2 + $0x18] sm:$0xff]
    %v1390 = vld [vmem:[#allocation2 + $0x20] sm:$0xf]
    %v1391 = vld [vmem:[#allocation2 + $0x24] sm:$0xff]
    %v1392 = vld [vmem:[#allocation2 + $0x2c] sm:$0xf]
    %v1393 = vld [vmem:[%s9] sm:$0xf]
    %v1394 = vld [vmem:[%s9 + $0x4] sm:$0xf]
    %v1395 = vld [vmem:[%s9 + $0x8] sm:$0xf]
    %v1396 = vld [vmem:[%s9 + $0xc] sm:$0xf]
    %v1397 = vld [vmem:[%s9 + $0x10] sm:$0xf]
    %v1398 = vld [vmem:[%s9 + $0x14] sm:$0xf]
    %v1399 = vld [vmem:[%s9 + $0x18] sm:$0xf]
    %v1400 = vld [vmem:[%s9 + $0x1c] sm:$0xf]
    %v1401 = vld [vmem:[%s9 + $0x20] sm:$0xf]
    %v1402 = vld [vmem:[%s9 + $0x24] sm:$0xf]
    %v1403 = vld [vmem:[%s9 + $0x28] sm:$0xf]
    %v1404 = vld [vmem:[%s9 + $0x2c] sm:$0xf]
    %v1405 = vld [vmem:[%s9 + $0x30] sm:$0xf]
    %v1406 = vld [vmem:[%s9 + $0x34] sm:$0xf]
    %v1407 = vld [vmem:[%s9 + $0x38] sm:$0xf]
    %v1408 = vld [vmem:[%s9 + $0x3c] sm:$0xf]
    %v1409 = vld [vmem:[%s9 + $0x40] sm:$0xf]
    %v1410 = vld [vmem:[%s9 + $0x44] sm:$0xf]
    %v1411 = vld [vmem:[%s9 + $0x48] sm:$0xf]
    %v1412 = vld [vmem:[%s9 + $0x4c] sm:$0xf]
    %v1413 = vld [vmem:[%s9 + $0x50] sm:$0xf]
    %v1414 = vld [vmem:[%s9 + $0x54] sm:$0xf]
    %v1415 = vld [vmem:[%s9 + $0x58] sm:$0xf]
    %v1416 = vld [vmem:[%s9 + $0x5c] sm:$0xf]
    %v1417 = vld [vmem:[%s9 + $0x60] sm:$0xf]
    %v1418 = vld [vmem:[%s9 + $0x64] sm:$0xf]
    %v1419 = vld [vmem:[%s9 + $0x68] sm:$0xf]
    %v1420 = vld [vmem:[%s9 + $0x6c] sm:$0xf]
    %v1421 = vld [vmem:[%s9 + $0x70] sm:$0xf]
    %v1422 = vld [vmem:[%s9 + $0x74] sm:$0xf]
    %v1423 = vld [vmem:[%s9 + $0x78] sm:$0xf]
    %v1424 = vld [vmem:[%s9 + $0x7c] sm:$0xf]
    %v1425 = vld [vmem:[%s9 + $0x80] sm:$0xf]
    %v1426 = vld [vmem:[%s9 + $0x84] sm:$0xf]
    %v1427 = vld [vmem:[%s9 + $0x88] sm:$0xf]
    %v1428 = vld [vmem:[%s9 + $0x8c] sm:$0xf]
    %v1429 = vld [vmem:[%s9 + $0x90] sm:$0xf]
    %v1430 = vld [vmem:[%s9 + $0x94] sm:$0xf]
    %v1431 = vld [vmem:[%s9 + $0x98] sm:$0xf]
    %v1432 = vld [vmem:[%s9 + $0x9c] sm:$0xf]
    %v1433 = vld [vmem:[%s9 + $0xa0] sm:$0xf]
    %v1434 = vld [vmem:[%s9 + $0xa4] sm:$0xf]
    %v1435 = vld [vmem:[%s9 + $0xa8] sm:$0xf]
    %v1436 = vld [vmem:[%s9 + $0xac] sm:$0xf]
    %v1437 = vld [vmem:[%s9 + $0xb0] sm:$0xf]
    %v1438 = vld [vmem:[%s9 + $0xb4] sm:$0xf]
    %v1439 = vld [vmem:[%s9 + $0xb8] sm:$0xf]
    %v1440 = vld [vmem:[%s9 + $0xbc] sm:$0xf]
    %v1449 = vunpack.c.l.b16 %v1385
    %v1450 = vunpack.c.h.b16 %v1385
    %v1451 = vunpack.c.l.b16 %v1386
    %v1452 = vunpack.c.l.b16 %v1387
    %v1453 = vunpack.c.h.b16 %v1387
    %v1454 = vunpack.c.l.b16 %v1388
    %v1455 = vunpack.c.l.b16 %v1389
    %v1456 = vunpack.c.h.b16 %v1389
    %v1457 = vunpack.c.l.b16 %v1390
    %v1458 = vunpack.c.l.b16 %v1391
    %v1459 = vunpack.c.h.b16 %v1391
    %v1460 = vunpack.c.l.b16 %v1392
    %v1461 = vpack.c.b16 %v1452, %v1449
    %v1462 = vpack.c.b16 %v1453, %v1450
    %v1463 = vpack.c.b16 %v1454, %v1451
    %v1464 = vpack.c.b16 %v1458, %v1455
    %v1465 = vpack.c.b16 %v1459, %v1456
    %v1466 = vpack.c.b16 %v1460, %v1457
    %v1521 = vunpack.c.l.b16 %v1393
    %v1522 = vunpack.c.l.b16 %v1394
    %v1523 = vunpack.c.l.b16 %v1395
    %v1524 = vunpack.c.l.b16 %v1396
    %v1525 = vunpack.c.l.b16 %v1397
    %v1526 = vunpack.c.l.b16 %v1398
    %v1527 = vunpack.c.l.b16 %v1399
    %v1528 = vunpack.c.l.b16 %v1400
    %v1529 = vunpack.c.l.b16 %v1401
    %v1530 = vunpack.c.l.b16 %v1402
    %v1531 = vunpack.c.l.b16 %v1403
    %v1532 = vunpack.c.l.b16 %v1404
    %v1533 = vunpack.c.l.b16 %v1405
    %v1534 = vunpack.c.l.b16 %v1406
    %v1535 = vunpack.c.l.b16 %v1407
    %v1536 = vunpack.c.l.b16 %v1408
    %v1537 = vunpack.c.l.b16 %v1409
    %v1538 = vunpack.c.l.b16 %v1410
    %v1539 = vunpack.c.l.b16 %v1411
    %v1540 = vunpack.c.l.b16 %v1412
    %v1541 = vunpack.c.l.b16 %v1413
    %v1542 = vunpack.c.l.b16 %v1414
    %v1543 = vunpack.c.l.b16 %v1415
    %v1544 = vunpack.c.l.b16 %v1416
    %v1545 = vunpack.c.l.b16 %v1417
    %v1546 = vunpack.c.l.b16 %v1418
    %v1547 = vunpack.c.l.b16 %v1419
    %v1548 = vunpack.c.l.b16 %v1420
    %v1549 = vunpack.c.l.b16 %v1421
    %v1550 = vunpack.c.l.b16 %v1422
    %v1551 = vunpack.c.l.b16 %v1423
    %v1552 = vunpack.c.l.b16 %v1424
    %v1553 = vunpack.c.l.b16 %v1425
    %v1554 = vunpack.c.l.b16 %v1426
    %v1555 = vunpack.c.l.b16 %v1427
    %v1556 = vunpack.c.l.b16 %v1428
    %v1557 = vunpack.c.l.b16 %v1429
    %v1558 = vunpack.c.l.b16 %v1430
    %v1559 = vunpack.c.l.b16 %v1431
    %v1560 = vunpack.c.l.b16 %v1432
    %v1561 = vunpack.c.l.b16 %v1433
    %v1562 = vunpack.c.l.b16 %v1434
    %v1563 = vunpack.c.l.b16 %v1435
    %v1564 = vunpack.c.l.b16 %v1436
    %v1565 = vunpack.c.l.b16 %v1437
    %v1566 = vunpack.c.l.b16 %v1438
    %v1567 = vunpack.c.l.b16 %v1439
    %v1568 = vunpack.c.l.b16 %v1440
    %v1569 = vpack.c.b16 %v1522, %v1521
    %v1570 = vpack.c.b16 %v1524, %v1523
    %v1571 = vpack.c.b16 %v1526, %v1525
    %v1572 = vpack.c.b16 %v1528, %v1527
    %v1573 = vpack.c.b16 %v1530, %v1529
    %v1574 = vpack.c.b16 %v1532, %v1531
    %v1575 = vpack.c.b16 %v1534, %v1533
    %v1576 = vpack.c.b16 %v1536, %v1535
    %v1577 = vpack.c.b16 %v1538, %v1537
    %v1578 = vpack.c.b16 %v1540, %v1539
    %v1579 = vpack.c.b16 %v1542, %v1541
    %v1580 = vpack.c.b16 %v1544, %v1543
    %v1581 = vpack.c.b16 %v1546, %v1545
    %v1582 = vpack.c.b16 %v1548, %v1547
    %v1583 = vpack.c.b16 %v1550, %v1549
    %v1584 = vpack.c.b16 %v1552, %v1551
    %v1585 = vpack.c.b16 %v1554, %v1553
    %v1586 = vpack.c.b16 %v1556, %v1555
    %v1587 = vpack.c.b16 %v1558, %v1557
    %v1588 = vpack.c.b16 %v1560, %v1559
    %v1589 = vpack.c.b16 %v1562, %v1561
    %v1590 = vpack.c.b16 %v1564, %v1563
    %v1591 = vpack.c.b16 %v1566, %v1565
    %v1592 = vpack.c.b16 %v1568, %v1567
    %1617 = vmatpush.bf16.msra.mxu0 %v1576
    %1618 = vmatpush.bf16.msra.mxu0 %v1575
    %1619 = vmatpush.bf16.msra.mxu0 %v1574
    %1620 = vmatpush.bf16.msra.mxu0 %v1573
    %1621 = vmatpush.bf16.msra.mxu0 %v1572
    %1622 = vmatpush.bf16.msra.mxu0 %v1571
    %1623 = vmatpush.bf16.msra.mxu0 %v1570
    %1624 = vmatpush.bf16.msra.mxu0 %v1569
    %1625 = vmatmul.bf16.gmra.mxu0 %v1461
    %v1626 = vpop.f32.mrf.mxu0
    %v1627 = vadd.f32 0.0, %v1626
    %v1628 = vpop.f32.mrf.mxu0
    %v1629 = vadd.f32 0.0, %v1628
    %1630 = vmatmul.bf16.gmra.mxu0 %v1464
    %v1631 = vpop.f32.mrf.mxu0
    %v1632 = vadd.f32 0.0, %v1631
    %v1633 = vpop.f32.mrf.mxu0
    %v1634 = vadd.f32 0.0, %v1633
    %1635 = vdwg.mxu0
    %1636 = vmatpush.bf16.msra.mxu0 %v1584
    %1637 = vmatpush.bf16.msra.mxu0 %v1583
    %1638 = vmatpush.bf16.msra.mxu0 %v1582
    %1639 = vmatpush.bf16.msra.mxu0 %v1581
    %1640 = vmatpush.bf16.msra.mxu0 %v1580
    %1641 = vmatpush.bf16.msra.mxu0 %v1579
    %1642 = vmatpush.bf16.msra.mxu0 %v1578
    %1643 = vmatpush.bf16.msra.mxu0 %v1577
    %1644 = vmatmul.bf16.gmra.mxu0 %v1462
    %v1645 = vpop.f32.mrf.mxu0
    %v1646 = vadd.f32 %v1627, %v1645
    %v1647 = vpop.f32.mrf.mxu0
    %v1648 = vadd.f32 %v1629, %v1647
    %1649 = vmatmul.bf16.gmra.mxu0 %v1465
    %v1650 = vpop.f32.mrf.mxu0
    %v1651 = vadd.f32 %v1632, %v1650
    %v1652 = vpop.f32.mrf.mxu0
    %v1653 = vadd.f32 %v1634, %v1652
    %1654 = vdwg.mxu0
    %1655 = vmatpush.bf16.msra.mxu0 %v1592
    %1656 = vmatpush.bf16.msra.mxu0 %v1591
    %1657 = vmatpush.bf16.msra.mxu0 %v1590
    %1658 = vmatpush.bf16.msra.mxu0 %v1589
    %1659 = vmatpush.bf16.msra.mxu0 %v1588
    %1660 = vmatpush.bf16.msra.mxu0 %v1587
    %1661 = vmatpush.bf16.msra.mxu0 %v1586
    %1662 = vmatpush.bf16.msra.mxu0 %v1585
    %1663 = vmatmul.bf16.gmra.mxu0 %v1463
    %v1664 = vpop.f32.mrf.mxu0
    %v1665 = vadd.f32 %v1646, %v1664
    %v1666 = vpop.f32.mrf.mxu0
    %v1667 = vadd.f32 %v1648, %v1666
    %1668 = vmatmul.bf16.gmra.mxu0 %v1466
    %v1669 = vpop.f32.mrf.mxu0
    %v1670 = vadd.f32 %v1651, %v1669
    %v1671 = vpop.f32.mrf.mxu0
    %v1672 = vadd.f32 %v1653, %v1671
    %1673 = vdwg.mxu0
    %v1675 = vperm.slane %v1384, 0
    %v1677 = vadd.f32 %v1675, %v1665
    %v1678 = vadd.f32 %v1675, %v1667
    %v1679 = vadd.f32 %v1675, %v1670
    %v1680 = vadd.f32 %v1675, %v1672
    %v1681 = vpack.c.bf16 %v1677, %v1677
    %v1682 = vpack.c.bf16 %v1678, %v1678
    %v1683 = vpack.c.bf16 %v1679, %v1679
    %v1684 = vpack.c.bf16 %v1680, %v1680
    %v1686 = vshrl.u32 %v1681, 16
    %v1688 = vrot.slane %v1686, 7
    %v1689 = vshll.u32 %v1681, 16
    %v1691 = vor.u32 %v1688, %v1689
    %v1692 = vrot.slane %v1688, 4
    %v1694 = vshrl.u32 %v1682, 16
    %v1696 = vrot.slane %v1694, 7
    %v1697 = vshll.u32 %v1682, 16
    %v1699 = vor.u32 %v1696, %v1697
    %v1700 = vsel %vm214, %v1692, %v1699
    %v1701 = vrot.slane %v1696, 4
    %v1703 = vshrl.u32 %v1683, 16
    %v1705 = vrot.slane %v1703, 7
    %v1706 = vshll.u32 %v1683, 16
    %v1708 = vor.u32 %v1705, %v1706
    %v1709 = vrot.slane %v1705, 4
    %v1711 = vshrl.u32 %v1684, 16
    %v1713 = vrot.slane %v1711, 7
    %v1714 = vshll.u32 %v1684, 16
    %v1716 = vor.u32 %v1713, %v1714
    %v1717 = vsel %vm214, %v1709, %v1716
    %v1718 = vrot.slane %v1713, 4
    %v1725 = vld [vmem:[#allocation3] sm:$0xf]
    %v1726 = vsel %vm256, %v1691, %v1725
    %1727 = vst [vmem:[#allocation3] sm:$0xf] %v1726
    %1728 = vst [vmem:[#allocation3 + $0x4] sm:$0xf] %v1700
    %v1729 = vld [vmem:[#allocation3 + $0x8] sm:$0x1]
    %v1730 = vsel %vm79, %v1701, %v1729
    %1731 = vst [vmem:[#allocation3 + $0x8] sm:$0x1] %v1730
    %v1732 = vld [vmem:[#allocation3 + $0xc] sm:$0xf]
    %v1733 = vsel %vm256, %v1708, %v1732
    %1734 = vst [vmem:[#allocation3 + $0xc] sm:$0xf] %v1733
    %1735 = vst [vmem:[#allocation3 + $0x10] sm:$0xf] %v1717
    %v1736 = vld [vmem:[#allocation3 + $0x14] sm:$0x1]
    %v1737 = vsel %vm79, %v1718, %v1736
    %1738 = vst [vmem:[#allocation3 + $0x14] sm:$0x1] %v1737
    %v1739 = vld [vmem:[#allocation3] sm:$0xf]
    %v1740 = vld [vmem:[#allocation3 + $0x4] sm:$0xf]
    %v1741 = vld [vmem:[#allocation3 + $0xc] sm:$0xf]
    %v1742 = vld [vmem:[#allocation3 + $0x10] sm:$0xf]
    %1743 = vst [vmem:[#allocation4] sm:$0xf] %v1739
    %1744 = vst [vmem:[#allocation4 + $0xc] sm:$0xf] %v1740
    %1745 = vst [vmem:[#allocation4 + $0x18] sm:$0xf] %v1741
    %1746 = vst [vmem:[#allocation4 + $0x24] sm:$0xf] %v1742
    %v1747 = vld [vmem:[#allocation3] sm:$0xf]
    %v1748 = vld [vmem:[#allocation3 + $0x4] sm:$0xf]
    %v1749 = vld [vmem:[#allocation3 + $0x8] sm:$0x1]
    %v1750 = vld [vmem:[#allocation3 + $0xc] sm:$0xf]
    %v1751 = vld [vmem:[#allocation3 + $0x10] sm:$0xf]
    %v1752 = vld [vmem:[#allocation3 + $0x14] sm:$0x1]
    %v1754 = vshrl.u32 %v1747, 16
    %v1756 = vrot.slane %v1754, 4
    %v1757 = vshll.u32 %v1747, 16
    %v1759 = vrot.slane %v1757, 5
    %v1760 = vor.u32 %v1756, %v1759
    %v1761 = vrot.slane %v1760, 4
    %v1763 = vshll.u32 %v1748, 16
    %v1765 = vrot.slane %v1763, 5
    %v1766 = vsel %vm287, %v1761, %v1765
    %v1767 = vshrl.u32 %v1748, 16
    %v1769 = vrot.slane %v1767, 4
    %v1770 = vor.u32 %v1769, %v1765
    %v1771 = vrot.slane %v1770, 4
    %v1773 = vshll.u32 %v1749, 16
    %v1775 = vrot.slane %v1773, 5
    %v1776 = vsel %vm287, %v1771, %v1775
    %v1778 = vshrl.u32 %v1750, 16
    %v1780 = vrot.slane %v1778, 4
    %v1781 = vshll.u32 %v1750, 16
    %v1783 = vrot.slane %v1781, 5
    %v1784 = vor.u32 %v1780, %v1783
    %v1785 = vrot.slane %v1784, 4
    %v1787 = vshll.u32 %v1751, 16
    %v1789 = vrot.slane %v1787, 5
    %v1790 = vsel %vm287, %v1785, %v1789
    %v1791 = vshrl.u32 %v1751, 16
    %v1793 = vrot.slane %v1791, 4
    %v1794 = vor.u32 %v1793, %v1789
    %v1795 = vrot.slane %v1794, 4
    %v1797 = vshll.u32 %v1752, 16
    %v1799 = vrot.slane %v1797, 5
    %v1800 = vsel %vm287, %v1795, %v1799
    %1805 = vst [vmem:[#allocation4 + $0x4] sm:$0xf] %v1766
    %1806 = vst [vmem:[#allocation4 + $0x10] sm:$0xf] %v1776
    %1807 = vst [vmem:[#allocation4 + $0x1c] sm:$0xf] %v1790
    %1808 = vst [vmem:[#allocation4 + $0x28] sm:$0xf] %v1800
    %v1809 = vld [vmem:[#allocation3] sm:$0xe]
    %v1810 = vld [vmem:[#allocation3 + $0x4] sm:$0xf]
    %v1811 = vld [vmem:[#allocation3 + $0x8] sm:$0x1]
    %v1812 = vld [vmem:[#allocation3 + $0xc] sm:$0xe]
    %v1813 = vld [vmem:[#allocation3 + $0x10] sm:$0xf]
    %v1814 = vld [vmem:[#allocation3 + $0x14] sm:$0x1]
    %v1821 = vrot.slane %v1809, 5
    %v1822 = vrot.slane %v1821, 4
    %v1823 = vrot.slane %v1810, 5
    %v1824 = vsel %vm358, %v1822, %v1823
    %v1825 = vrot.slane %v1823, 4
    %v1826 = vrot.slane %v1811, 5
    %v1827 = vsel %vm358, %v1825, %v1826
    %v1828 = vrot.slane %v1812, 5
    %v1829 = vrot.slane %v1828, 4
    %v1830 = vrot.slane %v1813, 5
    %v1831 = vsel %vm358, %v1829, %v1830
    %v1832 = vrot.slane %v1830, 4
    %v1833 = vrot.slane %v1814, 5
    %v1834 = vsel %vm358, %v1832, %v1833
    %1839 = vst [vmem:[#allocation4 + $0x8] sm:$0xf] %v1824
    %1840 = vst [vmem:[#allocation4 + $0x14] sm:$0xf] %v1827
    %1841 = vst [vmem:[#allocation4 + $0x20] sm:$0xf] %v1831
    %1842 = vst [vmem:[#allocation4 + $0x2c] sm:$0xf] %v1834
    %v1843 = vld [vmem:[%s12] sm:$0x1]
    %v1844 = vld [vmem:[#allocation4] sm:$0xff]
    %v1845 = vld [vmem:[#allocation4 + $0x8] sm:$0xf]
    %v1846 = vld [vmem:[#allocation4 + $0xc] sm:$0xff]
    %v1847 = vld [vmem:[#allocation4 + $0x14] sm:$0xf]
    %v1848 = vld [vmem:[#allocation4 + $0x18] sm:$0xff]
    %v1849 = vld [vmem:[#allocation4 + $0x20] sm:$0xf]
    %v1850 = vld [vmem:[#allocation4 + $0x24] sm:$0xff]
    %v1851 = vld [vmem:[#allocation4 + $0x2c] sm:$0xf]
    %v1852 = vld [vmem:[%s11] sm:$0xf]
    %v1853 = vld [vmem:[%s11 + $0x4] sm:$0xf]
    %v1854 = vld [vmem:[%s11 + $0x8] sm:$0xf]
    %v1855 = vld [vmem:[%s11 + $0xc] sm:$0xf]
    %v1856 = vld [vmem:[%s11 + $0x10] sm:$0xf]
    %v1857 = vld [vmem:[%s11 + $0x14] sm:$0xf]
    %v1858 = vld [vmem:[%s11 + $0x18] sm:$0xf]
    %v1859 = vld [vmem:[%s11 + $0x1c] sm:$0xf]
    %v1860 = vld [vmem:[%s11 + $0x20] sm:$0xf]
    %v1861 = vld [vmem:[%s11 + $0x24] sm:$0xf]
    %v1862 = vld [vmem:[%s11 + $0x28] sm:$0xf]
    %v1863 = vld [vmem:[%s11 + $0x2c] sm:$0xf]
    %v1864 = vld [vmem:[%s11 + $0x30] sm:$0xf]
    %v1865 = vld [vmem:[%s11 + $0x34] sm:$0xf]
    %v1866 = vld [vmem:[%s11 + $0x38] sm:$0xf]
    %v1867 = vld [vmem:[%s11 + $0x3c] sm:$0xf]
    %v1868 = vld [vmem:[%s11 + $0x40] sm:$0xf]
    %v1869 = vld [vmem:[%s11 + $0x44] sm:$0xf]
    %v1870 = vld [vmem:[%s11 + $0x48] sm:$0xf]
    %v1871 = vld [vmem:[%s11 + $0x4c] sm:$0xf]
    %v1872 = vld [vmem:[%s11 + $0x50] sm:$0xf]
    %v1873 = vld [vmem:[%s11 + $0x54] sm:$0xf]
    %v1874 = vld [vmem:[%s11 + $0x58] sm:$0xf]
    %v1875 = vld [vmem:[%s11 + $0x5c] sm:$0xf]
    %v1876 = vld [vmem:[%s11 + $0x60] sm:$0xf]
    %v1877 = vld [vmem:[%s11 + $0x64] sm:$0xf]
    %v1878 = vld [vmem:[%s11 + $0x68] sm:$0xf]
    %v1879 = vld [vmem:[%s11 + $0x6c] sm:$0xf]
    %v1880 = vld [vmem:[%s11 + $0x70] sm:$0xf]
    %v1881 = vld [vmem:[%s11 + $0x74] sm:$0xf]
    %v1882 = vld [vmem:[%s11 + $0x78] sm:$0xf]
    %v1883 = vld [vmem:[%s11 + $0x7c] sm:$0xf]
    %v1884 = vld [vmem:[%s11 + $0x80] sm:$0xf]
    %v1885 = vld [vmem:[%s11 + $0x84] sm:$0xf]
    %v1886 = vld [vmem:[%s11 + $0x88] sm:$0xf]
    %v1887 = vld [vmem:[%s11 + $0x8c] sm:$0xf]
    %v1888 = vld [vmem:[%s11 + $0x90] sm:$0xf]
    %v1889 = vld [vmem:[%s11 + $0x94] sm:$0xf]
    %v1890 = vld [vmem:[%s11 + $0x98] sm:$0xf]
    %v1891 = vld [vmem:[%s11 + $0x9c] sm:$0xf]
    %v1892 = vld [vmem:[%s11 + $0xa0] sm:$0xf]
    %v1893 = vld [vmem:[%s11 + $0xa4] sm:$0xf]
    %v1894 = vld [vmem:[%s11 + $0xa8] sm:$0xf]
    %v1895 = vld [vmem:[%s11 + $0xac] sm:$0xf]
    %v1896 = vld [vmem:[%s11 + $0xb0] sm:$0xf]
    %v1897 = vld [vmem:[%s11 + $0xb4] sm:$0xf]
    %v1898 = vld [vmem:[%s11 + $0xb8] sm:$0xf]
    %v1899 = vld [vmem:[%s11 + $0xbc] sm:$0xf]
    %v1908 = vunpack.c.l.b16 %v1844
    %v1909 = vunpack.c.h.b16 %v1844
    %v1910 = vunpack.c.l.b16 %v1845
    %v1911 = vunpack.c.l.b16 %v1846
    %v1912 = vunpack.c.h.b16 %v1846
    %v1913 = vunpack.c.l.b16 %v1847
    %v1914 = vunpack.c.l.b16 %v1848
    %v1915 = vunpack.c.h.b16 %v1848
    %v1916 = vunpack.c.l.b16 %v1849
    %v1917 = vunpack.c.l.b16 %v1850
    %v1918 = vunpack.c.h.b16 %v1850
    %v1919 = vunpack.c.l.b16 %v1851
    %v1920 = vpack.c.b16 %v1911, %v1908
    %v1921 = vpack.c.b16 %v1912, %v1909
    %v1922 = vpack.c.b16 %v1913, %v1910
    %v1923 = vpack.c.b16 %v1917, %v1914
    %v1924 = vpack.c.b16 %v1918, %v1915
    %v1925 = vpack.c.b16 %v1919, %v1916
    %v1980 = vunpack.c.l.b16 %v1852
    %v1981 = vunpack.c.l.b16 %v1853
    %v1982 = vunpack.c.l.b16 %v1854
    %v1983 = vunpack.c.l.b16 %v1855
    %v1984 = vunpack.c.l.b16 %v1856
    %v1985 = vunpack.c.l.b16 %v1857
    %v1986 = vunpack.c.l.b16 %v1858
    %v1987 = vunpack.c.l.b16 %v1859
    %v1988 = vunpack.c.l.b16 %v1860
    %v1989 = vunpack.c.l.b16 %v1861
    %v1990 = vunpack.c.l.b16 %v1862
    %v1991 = vunpack.c.l.b16 %v1863
    %v1992 = vunpack.c.l.b16 %v1864
    %v1993 = vunpack.c.l.b16 %v1865
    %v1994 = vunpack.c.l.b16 %v1866
    %v1995 = vunpack.c.l.b16 %v1867
    %v1996 = vunpack.c.l.b16 %v1868
    %v1997 = vunpack.c.l.b16 %v1869
    %v1998 = vunpack.c.l.b16 %v1870
    %v1999 = vunpack.c.l.b16 %v1871
    %v2000 = vunpack.c.l.b16 %v1872
    %v2001 = vunpack.c.l.b16 %v1873
    %v2002 = vunpack.c.l.b16 %v1874
    %v2003 = vunpack.c.l.b16 %v1875
    %v2004 = vunpack.c.l.b16 %v1876
    %v2005 = vunpack.c.l.b16 %v1877
    %v2006 = vunpack.c.l.b16 %v1878
    %v2007 = vunpack.c.l.b16 %v1879
    %v2008 = vunpack.c.l.b16 %v1880
    %v2009 = vunpack.c.l.b16 %v1881
    %v2010 = vunpack.c.l.b16 %v1882
    %v2011 = vunpack.c.l.b16 %v1883
    %v2012 = vunpack.c.l.b16 %v1884
    %v2013 = vunpack.c.l.b16 %v1885
    %v2014 = vunpack.c.l.b16 %v1886
    %v2015 = vunpack.c.l.b16 %v1887
    %v2016 = vunpack.c.l.b16 %v1888
    %v2017 = vunpack.c.l.b16 %v1889
    %v2018 = vunpack.c.l.b16 %v1890
    %v2019 = vunpack.c.l.b16 %v1891
    %v2020 = vunpack.c.l.b16 %v1892
    %v2021 = vunpack.c.l.b16 %v1893
    %v2022 = vunpack.c.l.b16 %v1894
    %v2023 = vunpack.c.l.b16 %v1895
    %v2024 = vunpack.c.l.b16 %v1896
    %v2025 = vunpack.c.l.b16 %v1897
    %v2026 = vunpack.c.l.b16 %v1898
    %v2027 = vunpack.c.l.b16 %v1899
    %v2028 = vpack.c.b16 %v1981, %v1980
    %v2029 = vpack.c.b16 %v1983, %v1982
    %v2030 = vpack.c.b16 %v1985, %v1984
    %v2031 = vpack.c.b16 %v1987, %v1986
    %v2032 = vpack.c.b16 %v1989, %v1988
    %v2033 = vpack.c.b16 %v1991, %v1990
    %v2034 = vpack.c.b16 %v1993, %v1992
    %v2035 = vpack.c.b16 %v1995, %v1994
    %v2036 = vpack.c.b16 %v1997, %v1996
    %v2037 = vpack.c.b16 %v1999, %v1998
    %v2038 = vpack.c.b16 %v2001, %v2000
    %v2039 = vpack.c.b16 %v2003, %v2002
    %v2040 = vpack.c.b16 %v2005, %v2004
    %v2041 = vpack.c.b16 %v2007, %v2006
    %v2042 = vpack.c.b16 %v2009, %v2008
    %v2043 = vpack.c.b16 %v2011, %v2010
    %v2044 = vpack.c.b16 %v2013, %v2012
    %v2045 = vpack.c.b16 %v2015, %v2014
    %v2046 = vpack.c.b16 %v2017, %v2016
    %v2047 = vpack.c.b16 %v2019, %v2018
    %v2048 = vpack.c.b16 %v2021, %v2020
    %v2049 = vpack.c.b16 %v2023, %v2022
    %v2050 = vpack.c.b16 %v2025, %v2024
    %v2051 = vpack.c.b16 %v2027, %v2026
    %2076 = vmatpush.bf16.msra.mxu0 %v2035
    %2077 = vmatpush.bf16.msra.mxu0 %v2034
    %2078 = vmatpush.bf16.msra.mxu0 %v2033
    %2079 = vmatpush.bf16.msra.mxu0 %v2032
    %2080 = vmatpush.bf16.msra.mxu0 %v2031
    %2081 = vmatpush.bf16.msra.mxu0 %v2030
    %2082 = vmatpush.bf16.msra.mxu0 %v2029
    %2083 = vmatpush.bf16.msra.mxu0 %v2028
    %2084 = vmatmul.bf16.gmra.mxu0 %v1920
    %v2085 = vpop.f32.mrf.mxu0
    %v2086 = vadd.f32 0.0, %v2085
    %v2087 = vpop.f32.mrf.mxu0
    %v2088 = vadd.f32 0.0, %v2087
    %2089 = vmatmul.bf16.gmra.mxu0 %v1923
    %v2090 = vpop.f32.mrf.mxu0
    %v2091 = vadd.f32 0.0, %v2090
    %v2092 = vpop.f32.mrf.mxu0
    %v2093 = vadd.f32 0.0, %v2092
    %2094 = vdwg.mxu0
    %2095 = vmatpush.bf16.msra.mxu0 %v2043
    %2096 = vmatpush.bf16.msra.mxu0 %v2042
    %2097 = vmatpush.bf16.msra.mxu0 %v2041
    %2098 = vmatpush.bf16.msra.mxu0 %v2040
    %2099 = vmatpush.bf16.msra.mxu0 %v2039
    %2100 = vmatpush.bf16.msra.mxu0 %v2038
    %2101 = vmatpush.bf16.msra.mxu0 %v2037
    %2102 = vmatpush.bf16.msra.mxu0 %v2036
    %2103 = vmatmul.bf16.gmra.mxu0 %v1921
    %v2104 = vpop.f32.mrf.mxu0
    %v2105 = vadd.f32 %v2086, %v2104
    %v2106 = vpop.f32.mrf.mxu0
    %v2107 = vadd.f32 %v2088, %v2106
    %2108 = vmatmul.bf16.gmra.mxu0 %v1924
    %v2109 = vpop.f32.mrf.mxu0
    %v2110 = vadd.f32 %v2091, %v2109
    %v2111 = vpop.f32.mrf.mxu0
    %v2112 = vadd.f32 %v2093, %v2111
    %2113 = vdwg.mxu0
    %2114 = vmatpush.bf16.msra.mxu0 %v2051
    %2115 = vmatpush.bf16.msra.mxu0 %v2050
    %2116 = vmatpush.bf16.msra.mxu0 %v2049
    %2117 = vmatpush.bf16.msra.mxu0 %v2048
    %2118 = vmatpush.bf16.msra.mxu0 %v2047
    %2119 = vmatpush.bf16.msra.mxu0 %v2046
    %2120 = vmatpush.bf16.msra.mxu0 %v2045
    %2121 = vmatpush.bf16.msra.mxu0 %v2044
    %2122 = vmatmul.bf16.gmra.mxu0 %v1922
    %v2123 = vpop.f32.mrf.mxu0
    %v2124 = vadd.f32 %v2105, %v2123
    %v2125 = vpop.f32.mrf.mxu0
    %v2126 = vadd.f32 %v2107, %v2125
    %2127 = vmatmul.bf16.gmra.mxu0 %v1925
    %v2128 = vpop.f32.mrf.mxu0
    %v2129 = vadd.f32 %v2110, %v2128
    %v2130 = vpop.f32.mrf.mxu0
    %v2131 = vadd.f32 %v2112, %v2130
    %2132 = vdwg.mxu0
    %v2134 = vperm.slane %v1843, 0
    %v2136 = vadd.f32 %v2134, %v2124
    %v2137 = vadd.f32 %v2134, %v2126
    %v2138 = vadd.f32 %v2134, %v2129
    %v2139 = vadd.f32 %v2134, %v2131
    %vm2140 = vcmp.gt.f32.partialorder %v2136, 0.0
    %vm2141 = vcmp.gt.f32.partialorder %v2137, 0.0
    %vm2142 = vcmp.gt.f32.partialorder %v2138, 0.0
    %vm2143 = vcmp.gt.f32.partialorder %v2139, 0.0
    %v2144 = vmul.f32 %v2136, 0.2
    %v2145 = vmul.f32 %v2137, 0.2
    %v2146 = vmul.f32 %v2138, 0.2
    %v2147 = vmul.f32 %v2139, 0.2
    %v2148 = vsel %vm2140, %v2136, %v2144
    %v2149 = vsel %vm2141, %v2137, %v2145
    %v2150 = vsel %vm2142, %v2138, %v2146
    %v2151 = vsel %vm2143, %v2139, %v2147
    %s2152 = scalar_lea.vmem %s13, 32
    %2153 = vst [vmem:[%s2152] sm:$0xff] %v2148
    %2154 = vst [vmem:[%s2152 + $0x8] sm:$0xff] %v2149
    %2155 = vst [vmem:[%s2152 + $0x30] sm:$0xff] %v2150
    %2156 = vst [vmem:[%s2152 + $0x38] sm:$0xff] %v2151
    // Predicated region
    $region62: #{dense_cct_middle_forward.1} parent=1 // pred_check
      _
    $region63: #{dense_cct_middle_forward.1} parent=1 // pred_check_branch
      %2158 = sbr.rel (0) target = $region65
    $region64: #{dense_cct_middle_forward.1} parent=1 // pred_region
      _
    $region65: #{dense_cct_middle_forward.1} parent=1 // pred_fallthru
      _
    // Predicated region
    $region66: #{dense_cct_middle_forward.1} parent=1 // pred_check
      _
    $region67: #{dense_cct_middle_forward.1} parent=1 // pred_check_branch
      %2160 = sbr.rel (0) target = $region69
    $region68: #{dense_cct_middle_forward.1} parent=1 // pred_region
      _
    $region69: #{dense_cct_middle_forward.1} parent=1 // pred_fallthru
      _
    %2161 = vsyncpa [#allocation6], 1
    %2162 = vsyncpa [#allocation8], 1

</llo_original>
